<compile_context>
chip_gen: v7x
topology: tpu7x:2x2x1
jax: 0.10.0
libtpu: 0.0.40
codegen_flags: <defaults>
</compile_context>

<pallas_src>
import functools

import jax
import jax.numpy as jnp
from jax.experimental import pallas as pl
from jax.experimental.pallas import tpu as pltpu

FEAT_DIM = 512          # resnet18 fc.in_features
STEM_CH = 64
KH = KW = 7
KTAPS = KH * KW         # 49
KPAD = 64               # conv GEMM K padded 49 -> 64 with zeros (cheap cadence win)
STRIDE = 2
PAD = 3
HIDDEN = 256


# ----------------------------------------------------------------- fused kernel

def _fused_siamese_kernel(pat_ref, convw_ref, projw_ref, projb_ref,
                          w1a_ref, w1b_ref, b1_ref, w2_ref, b2_ref,
                          o_ref, *, inv_pool, pb):
    """conv1(7x7,s2,p3)+ReLU + global-avg-pool + Linear(64->512)+ReLU   (per image)
       + siamese head Linear(1024->256)+ReLU + Linear(256->1)           (per pair)

    pat_ref : (2*pb, OH*OW, KPAD) bf16  -- wrapper-side im2col patches
              rows [0, pb)  = imageA of this block's pairs,
              rows [pb,2pb) = imageB of the same pairs.
    o_ref   : (1, pb, 1) f32            -- head scores for this block's pairs.
    """
    tb, m, kp = pat_ref.shape

    # conv1 as one lane-dense GEMM (M = tb*m, K = KPAD, N = 64), f32 accumulation.
    pat = pat_ref[...].reshape(tb * m, kp)
    conv = jnp.dot(pat, convw_ref[...], preferred_element_type=jnp.float32)
    conv = jnp.maximum(conv, 0.0)                                      # ReLU
    pooled = conv.reshape(tb, m, STEM_CH).sum(axis=1) * inv_pool       # global avg pool

    feat = jnp.dot(pooled.astype(jnp.bfloat16), projw_ref[...],
                   preferred_element_type=jnp.float32)
    feat = jnp.maximum(feat + projb_ref[...], 0.0).astype(jnp.bfloat16)  # (tb, 512)

    fa = feat[:pb, :]                    # branch A features (static slice)
    fb = feat[pb:, :]                    # branch B features
    # cat((fa, fb), 1) @ W1  ==  fa @ W1[:F] + fb @ W1[F:]   (concat fused away)
    h = jnp.dot(fa, w1a_ref[...], preferred_element_type=jnp.float32)
    h = h + jnp.dot(fb, w1b_ref[...], preferred_element_type=jnp.float32)
    h = jnp.maximum(h + b1_ref[...], 0.0)                              # Linear+ReLU
    # Linear(256, 1): N=1 GEMM done as VPU broadcast-multiply + lane reduce.
    score = jnp.sum(h * w2_ref[...], axis=-1, keepdims=True) + b2_ref[...]
    o_ref[...] = score.reshape(o_ref.shape)


# --------------------------------------------------------------------- wrappers

def _im2col_patches(x_nchw, oh, ow):
    """(N,1,H,W) f32 -> (N, OH*OW, KPAD) bf16 patch matrix (taps zero-padded 49->64).

    Done in plain XLA: at small images the 49x read amplification is irrelevant and
    the Pallas kernel becomes pure GEMM (no in-kernel relayout)."""
    n = x_nchw.shape[0]
    xp = jnp.pad(x_nchw[:, 0], ((0, 0), (PAD, PAD), (PAD, PAD)))
    planes = []
    for i in range(KH):                       # tap order kh*7 + kw (matches weight)
        for j in range(KW):
            planes.append(xp[:, i:i + STRIDE * oh:STRIDE, j:j + STRIDE * ow:STRIDE])
    pat = jnp.stack(planes, axis=-1).reshape(n, oh * ow, KTAPS)
    pat = jnp.pad(pat, ((0, 0), (0, 0), (0, KPAD - KTAPS)))
    return pat.astype(jnp.bfloat16)


def siamese_forward(params, imageA, imageB):
    """Stand-in ResNet18 front (conv1 + GAP + 64->512 proj) + siamese FC head."""
    # TODO(synk): pretrained ResNet18 body (BN, maxpool, layer1-4 residual blocks)
    # needs a checkpoint; this stand-in keeps the 512-d feature interface.
    B, C, H, W = imageA.shape
    assert C == 1 and imageB.shape == imageA.shape
    OH = (H + 2 * PAD - KH) // STRIDE + 1
    OW = (W + 2 * PAD - KW) // STRIDE + 1
    OHW = OH * OW

    # Batch blocking: NB >= 2 so the "parallel" axis can shard over v7x's 2 TCs;
    # cap per-block VMEM (double-buffered bf16 patch slab + f32 conv intermediate).
    nb = 2 if B >= 2 else 1
    pb = -(-B // nb)
    while pb > 1 and (2 * pb * OHW * KPAD * 2 * 2
                      + 2 * pb * OHW * STEM_CH * 4) > 24 * 1024 * 1024:
        nb *= 2
        pb = -(-B // nb)
    B_pad = nb * pb
    TB = 2 * pb

    padA = jnp.pad(imageA, ((0, B_pad - B), (0, 0), (0, 0), (0, 0)))
    padB = jnp.pad(imageB, ((0, B_pad - B), (0, 0), (0, 0), (0, 0)))
    # Per batch-block layout: [pb imageA rows, pb imageB rows] of the same pairs.
    x = jnp.concatenate([padA.reshape(nb, pb, 1, H, W),
                         padB.reshape(nb, pb, 1, H, W)], axis=1)
    x = x.reshape(2 * B_pad, 1, H, W)

    pat = _im2col_patches(x, OH, OW)                       # (2*B_pad, OHW, KPAD) bf16

    cost = pl.CostEstimate(
        flops=(2 * 2 * B_pad * OHW * KPAD * STEM_CH          # conv GEMM
               + 2 * 2 * B_pad * STEM_CH * FEAT_DIM          # 64->512 proj
               + 2 * B_pad * 2 * FEAT_DIM * HIDDEN           # fc1
               + 2 * B_pad * HIDDEN),                        # fc2
        transcendentals=0,
        bytes_accessed=int(pat.size * 2 + KPAD * STEM_CH * 2
                           + STEM_CH * FEAT_DIM * 2 + FEAT_DIM * 4
                           + 2 * FEAT_DIM * HIDDEN * 2 + HIDDEN * 8
                           + B_pad * 4))

    wmap = lambda b: (0, 0)                                  # replicated weights
    out = pl.pallas_call(
        functools.partial(_fused_siamese_kernel, inv_pool=1.0 / float(OHW), pb=pb),
        out_shape=jax.ShapeDtypeStruct((nb, pb, 1), jnp.float32),
        grid=(nb,),
        in_specs=[
            pl.BlockSpec((TB, OHW, KPAD), lambda b: (b, 0, 0)),
            pl.BlockSpec((KPAD, STEM_CH), wmap),
            pl.BlockSpec((STEM_CH, FEAT_DIM), wmap),
            pl.BlockSpec((1, FEAT_DIM), wmap),
            pl.BlockSpec((FEAT_DIM, HIDDEN), wmap),
            pl.BlockSpec((FEAT_DIM, HIDDEN), wmap),
            pl.BlockSpec((1, HIDDEN), wmap),
            pl.BlockSpec((1, HIDDEN), wmap),
            pl.BlockSpec((1, 1), wmap),
        ],
        out_specs=pl.BlockSpec((1, pb, 1), lambda b: (b, 0, 0)),
        compiler_params=pltpu.CompilerParams(
            dimension_semantics=("parallel",),
            vmem_limit_bytes=32 * 1024 * 1024),
        cost_estimate=cost,
    )(pat, params["conv_w_kc"], params["proj_w"], params["proj_b"],
      params["fc1_wa"], params["fc1_wb"], params["fc1_b"],
      params["fc2_w_row"], params["fc2_b"])

    return out.reshape(B_pad, 1)[:B]


# ------------------------------------------------------------------------ model

def init_params(key):
    ks = jax.random.split(key, 7)

    def uniform(k, shape, fan_in):
        bound = 1.0 / jnp.sqrt(jnp.float32(fan_in))
        return jax.random.uniform(k, shape, jnp.float32, -bound, bound)

    conv_w = uniform(ks[0], (STEM_CH, 1, KH, KW), KTAPS)           # Conv2d(1,64,7,7)
    conv_w_kc = conv_w.reshape(STEM_CH, KTAPS).T                   # (49, 64)
    conv_w_kc = jnp.pad(conv_w_kc, ((0, KPAD - KTAPS), (0, 0)))    # zero taps 49..63
    fc1_w = uniform(ks[3], (2 * FEAT_DIM, HIDDEN), 2 * FEAT_DIM)   # Linear(1024, 256)
    return {
        # kernel-ready layouts prepared ONCE at init (no per-forward slicing)
        "conv_w_kc": conv_w_kc.astype(jnp.bfloat16),               # (KPAD, 64)
        "proj_w": uniform(ks[1], (STEM_CH, FEAT_DIM), STEM_CH).astype(jnp.bfloat16),
        "proj_b": uniform(ks[2], (1, FEAT_DIM), STEM_CH),
        "fc1_wa": fc1_w[:FEAT_DIM].astype(jnp.bfloat16),           # (512, 256)
        "fc1_wb": fc1_w[FEAT_DIM:].astype(jnp.bfloat16),           # (512, 256)
        "fc1_b": uniform(ks[4], (1, HIDDEN), 2 * FEAT_DIM),
        "fc2_w_row": uniform(ks[5], (1, HIDDEN), HIDDEN),          # Linear(256,1) w.T
        "fc2_b": uniform(ks[6], (1, 1), HIDDEN),
    }


if __name__ == "__main__":
    key = jax.random.PRNGKey(0)
    kp, ka, kb = jax.random.split(key, 3)
    params = init_params(kp)
    imageA = jax.random.normal(ka, (2, 1, 32, 32), jnp.float32)
    imageB = jax.random.normal(kb, (2, 1, 32, 32), jnp.float32)

    out = jax.jit(siamese_forward)(params, imageA, imageB)
    out = jax.block_until_ready(out)
    assert out.shape == (2, 1) and out.dtype == jnp.float32
    print("KERNEL_OK")
</pallas_src>

<mosaic_0001>
module attributes {stable_mosaic.version = 11 : i64} {
  func.func @_fused_siamese_kernel(%arg0: i32, %arg1: memref<2x256x64xbf16, #tpu.memory_space<vmem>>, %arg2: memref<64x64xbf16, #tpu.memory_space<vmem>>, %arg3: memref<64x512xbf16, #tpu.memory_space<vmem>>, %arg4: memref<1x512xf32, #tpu.memory_space<vmem>>, %arg5: memref<512x256xbf16, #tpu.memory_space<vmem>>, %arg6: memref<512x256xbf16, #tpu.memory_space<vmem>>, %arg7: memref<1x256xf32, #tpu.memory_space<vmem>>, %arg8: memref<1x256xf32, #tpu.memory_space<vmem>>, %arg9: memref<1x1xf32, #tpu.memory_space<vmem>>, %arg10: memref<1x1x1xf32, #tpu.memory_space<vmem>>) attributes {dimension_semantics = [#tpu.dimension_semantics<parallel>], iteration_bounds = array<i64: 2>, scalar_prefetch = 0 : i64, scratch_operands = 0 : i64, tpu.core_type = #tpu.core_type<tc>, window_params = [{transform_indices = @transform_0, window_bounds = array<i64: 2, 256, 64>}, {pipeline_mode = #tpu.pipeline_mode<synchronous>, transform_indices = @transform_1, window_bounds = array<i64: 64, 64>}, {pipeline_mode = #tpu.pipeline_mode<synchronous>, transform_indices = @transform_2, window_bounds = array<i64: 64, 512>}, {pipeline_mode = #tpu.pipeline_mode<synchronous>, transform_indices = @transform_3, window_bounds = array<i64: 1, 512>}, {pipeline_mode = #tpu.pipeline_mode<synchronous>, transform_indices = @transform_4, window_bounds = array<i64: 512, 256>}, {pipeline_mode = #tpu.pipeline_mode<synchronous>, transform_indices = @transform_5, window_bounds = array<i64: 512, 256>}, {pipeline_mode = #tpu.pipeline_mode<synchronous>, transform_indices = @transform_6, window_bounds = array<i64: 1, 256>}, {pipeline_mode = #tpu.pipeline_mode<synchronous>, transform_indices = @transform_7, window_bounds = array<i64: 1, 256>}, {pipeline_mode = #tpu.pipeline_mode<synchronous>, transform_indices = @transform_8, window_bounds = array<i64: 1, 1>}, {transform_indices = @transform_9, window_bounds = array<i64: 1, 1, 1>}]} {
    %c0 = arith.constant 0 : index
    %c0_0 = arith.constant 0 : index
    %c0_1 = arith.constant 0 : index
    %0 = vector.load %arg1[%c0, %c0_0, %c0_1] : memref<2x256x64xbf16, #tpu.memory_space<vmem>>, vector<2x256x64xbf16>
    %1 = vector.shape_cast %0 : vector<2x256x64xbf16> to vector<512x64xbf16>
    %c0_2 = arith.constant 0 : index
    %c0_3 = arith.constant 0 : index
    %2 = vector.load %arg2[%c0_2, %c0_3] : memref<64x64xbf16, #tpu.memory_space<vmem>>, vector<64x64xbf16>
    %cst = arith.constant dense<0.000000e+00> : vector<512x64xf32>
    %3 = tpu.matmul %1, %2, %cst {dimension_numbers = #tpu.dot_dimension_numbers<[1], [0], [0], [1], [0, 0, 1, 1], [], []>} : vector<512x64xbf16>, vector<64x64xbf16>, vector<512x64xf32> -> vector<512x64xf32>
    %cst_4 = arith.constant 0.000000e+00 : f32
    %4 = vector.broadcast %cst_4 : f32 to vector<512x64xf32>
    %5 = arith.maximumf %3, %4 : vector<512x64xf32>
    %6 = vector.shape_cast %5 : vector<512x64xf32> to vector<2x256x64xf32>
    %cst_5 = arith.constant dense<0.000000e+00> : vector<2x64xf32>
    %7 = vector.multi_reduction <add>, %6, %cst_5 [1] : vector<2x256x64xf32> to vector<2x64xf32>
    %cst_6 = arith.constant 3.906250e-03 : f32
    %8 = vector.broadcast %cst_6 : f32 to vector<2x64xf32>
    %9 = arith.mulf %7, %8 : vector<2x64xf32>
    %10 = arith.truncf %9 : vector<2x64xf32> to vector<2x64xbf16>
    %c0_7 = arith.constant 0 : index
    %c0_8 = arith.constant 0 : index
    %11 = vector.load %arg3[%c0_7, %c0_8] : memref<64x512xbf16, #tpu.memory_space<vmem>>, vector<64x512xbf16>
    %cst_9 = arith.constant dense<0.000000e+00> : vector<2x512xf32>
    %12 = tpu.matmul %10, %11, %cst_9 {dimension_numbers = #tpu.dot_dimension_numbers<[1], [0], [0], [1], [0, 0, 1, 1], [], []>} : vector<2x64xbf16>, vector<64x512xbf16>, vector<2x512xf32> -> vector<2x512xf32>
    %c0_10 = arith.constant 0 : index
    %c0_11 = arith.constant 0 : index
    %13 = vector.load %arg4[%c0_10, %c0_11] : memref<1x512xf32, #tpu.memory_space<vmem>>, vector<1x512xf32>
    %14 = vector.broadcast %13 : vector<1x512xf32> to vector<2x512xf32>
    %15 = arith.addf %12, %14 : vector<2x512xf32>
    %cst_12 = arith.constant 0.000000e+00 : f32
    %16 = vector.broadcast %cst_12 : f32 to vector<2x512xf32>
    %17 = arith.maximumf %15, %16 : vector<2x512xf32>
    %18 = arith.truncf %17 : vector<2x512xf32> to vector<2x512xbf16>
    %19 = vector.extract_strided_slice %18 {offsets = [0, 0], sizes = [1, 512], strides = [1, 1]} : vector<2x512xbf16> to vector<1x512xbf16>
    %20 = vector.extract_strided_slice %18 {offsets = [1, 0], sizes = [1, 512], strides = [1, 1]} : vector<2x512xbf16> to vector<1x512xbf16>
    %c0_13 = arith.constant 0 : index
    %c0_14 = arith.constant 0 : index
    %21 = vector.load %arg5[%c0_13, %c0_14] : memref<512x256xbf16, #tpu.memory_space<vmem>>, vector<512x256xbf16>
    %cst_15 = arith.constant dense<0.000000e+00> : vector<1x256xf32>
    %22 = tpu.matmul %19, %21, %cst_15 {dimension_numbers = #tpu.dot_dimension_numbers<[1], [0], [0], [1], [0, 0, 1, 1], [], []>} : vector<1x512xbf16>, vector<512x256xbf16>, vector<1x256xf32> -> vector<1x256xf32>
    %c0_16 = arith.constant 0 : index
    %c0_17 = arith.constant 0 : index
    %23 = vector.load %arg6[%c0_16, %c0_17] : memref<512x256xbf16, #tpu.memory_space<vmem>>, vector<512x256xbf16>
    %cst_18 = arith.constant dense<0.000000e+00> : vector<1x256xf32>
    %24 = tpu.matmul %20, %23, %cst_18 {dimension_numbers = #tpu.dot_dimension_numbers<[1], [0], [0], [1], [0, 0, 1, 1], [], []>} : vector<1x512xbf16>, vector<512x256xbf16>, vector<1x256xf32> -> vector<1x256xf32>
    %25 = arith.addf %22, %24 : vector<1x256xf32>
    %c0_19 = arith.constant 0 : index
    %c0_20 = arith.constant 0 : index
    %26 = vector.load %arg7[%c0_19, %c0_20] : memref<1x256xf32, #tpu.memory_space<vmem>>, vector<1x256xf32>
    %27 = arith.addf %25, %26 : vector<1x256xf32>
    %cst_21 = arith.constant 0.000000e+00 : f32
    %28 = vector.broadcast %cst_21 : f32 to vector<1x256xf32>
    %29 = arith.maximumf %27, %28 : vector<1x256xf32>
    %c0_22 = arith.constant 0 : index
    %c0_23 = arith.constant 0 : index
    %30 = vector.load %arg8[%c0_22, %c0_23] : memref<1x256xf32, #tpu.memory_space<vmem>>, vector<1x256xf32>
    %31 = arith.mulf %29, %30 : vector<1x256xf32>
    %cst_24 = arith.constant dense<0.000000e+00> : vector<1xf32>
    %32 = vector.multi_reduction <add>, %31, %cst_24 [1] : vector<1x256xf32> to vector<1xf32>
    %33 = vector.shape_cast %32 : vector<1xf32> to vector<1x1xf32>
    %c0_25 = arith.constant 0 : index
    %c0_26 = arith.constant 0 : index
    %34 = vector.load %arg9[%c0_25, %c0_26] : memref<1x1xf32, #tpu.memory_space<vmem>>, vector<1x1xf32>
    %35 = arith.addf %33, %34 : vector<1x1xf32>
    %36 = vector.shape_cast %35 : vector<1x1xf32> to vector<1x1x1xf32>
    %c0_27 = arith.constant 0 : index
    %c0_28 = arith.constant 0 : index
    %c0_29 = arith.constant 0 : index
    %37 = vector.load %arg10[%c0_27, %c0_28, %c0_29] : memref<1x1x1xf32, #tpu.memory_space<vmem>>, vector<1x1x1xf32>
    tpu.vector_store %arg10[%c0_27, %c0_28, %c0_29], %36 {strides = array<i32>} : memref<1x1x1xf32, #tpu.memory_space<vmem>>, vector<1x1x1xf32>,
    return
  }
  func.func @transform_0(%arg0: i32) -> (i32, i32, i32) {
    %c0_i32 = arith.constant 0 : i32
    %c0_i32_0 = arith.constant 0 : i32
    %c0_i32_1 = arith.constant 0 : i32
    return %arg0, %c0_i32, %c0_i32_0 : i32, i32, i32
  }
  func.func @transform_1(%arg0: i32) -> (i32, i32) {
    %c0_i32 = arith.constant 0 : i32
    %c0_i32_0 = arith.constant 0 : i32
    %c0_i32_1 = arith.constant 0 : i32
    return %c0_i32, %c0_i32_0 : i32, i32
  }
  func.func @transform_2(%arg0: i32) -> (i32, i32) {
    %c0_i32 = arith.constant 0 : i32
    %c0_i32_0 = arith.constant 0 : i32
    %c0_i32_1 = arith.constant 0 : i32
    return %c0_i32, %c0_i32_0 : i32, i32
  }
  func.func @transform_3(%arg0: i32) -> (i32, i32) {
    %c0_i32 = arith.constant 0 : i32
    %c0_i32_0 = arith.constant 0 : i32
    %c0_i32_1 = arith.constant 0 : i32
    return %c0_i32, %c0_i32_0 : i32, i32
  }
  func.func @transform_4(%arg0: i32) -> (i32, i32) {
    %c0_i32 = arith.constant 0 : i32
    %c0_i32_0 = arith.constant 0 : i32
    %c0_i32_1 = arith.constant 0 : i32
    return %c0_i32, %c0_i32_0 : i32, i32
  }
  func.func @transform_5(%arg0: i32) -> (i32, i32) {
    %c0_i32 = arith.constant 0 : i32
    %c0_i32_0 = arith.constant 0 : i32
    %c0_i32_1 = arith.constant 0 : i32
    return %c0_i32, %c0_i32_0 : i32, i32
  }
  func.func @transform_6(%arg0: i32) -> (i32, i32) {
    %c0_i32 = arith.constant 0 : i32
    %c0_i32_0 = arith.constant 0 : i32
    %c0_i32_1 = arith.constant 0 : i32
    return %c0_i32, %c0_i32_0 : i32, i32
  }
  func.func @transform_7(%arg0: i32) -> (i32, i32) {
    %c0_i32 = arith.constant 0 : i32
    %c0_i32_0 = arith.constant 0 : i32
    %c0_i32_1 = arith.constant 0 : i32
    return %c0_i32, %c0_i32_0 : i32, i32
  }
  func.func @transform_8(%arg0: i32) -> (i32, i32) {
    %c0_i32 = arith.constant 0 : i32
    %c0_i32_0 = arith.constant 0 : i32
    %c0_i32_1 = arith.constant 0 : i32
    return %c0_i32, %c0_i32_0 : i32, i32
  }
  func.func @transform_9(%arg0: i32) -> (i32, i32, i32) {
    %c0_i32 = arith.constant 0 : i32
    %c0_i32_0 = arith.constant 0 : i32
    %c0_i32_1 = arith.constant 0 : i32
    return %arg0, %c0_i32, %c0_i32_0 : i32, i32, i32
  }
}

</mosaic_0001>

<llo_original>
// kernel: siamese_forward.1
$region0: #{siamese_forward.1}
  #allocation0 [shape = 'u32[]', space=smem, size = 0x4, offset = 0x4, fixed_abs, tag = 'smem constant byte address 0x4 - core index']
  #allocation1 [shape = 'u32[144,128]{1,0:T(1,128)}', space=vmem, size = 0x12000, scoped, tag = 'internal scratch']
  #allocation2 [shape = 'f32[1,1]{1,0:T(1,128)S(1)}', space=vmem, size = 0x200, scoped, tag = 'scoped memory for siamese_forward.1']
  %s0 = inlined_call_operand.vmem [shape: bf16[4,256,64], index: 0, kind: input, shape index: {}]
  %s1 = inlined_call_operand.vmem [shape: bf16[64,64], index: 1, kind: input, shape index: {}]
  %s2 = inlined_call_operand.vmem [shape: bf16[64,512], index: 2, kind: input, shape index: {}]
  %s3 = inlined_call_operand.vmem [shape: f32[1,512], index: 3, kind: input, shape index: {}]
  %s4 = inlined_call_operand.vmem [shape: bf16[512,256], index: 4, kind: input, shape index: {}]
  %s5 = inlined_call_operand.vmem [shape: bf16[512,256], index: 5, kind: input, shape index: {}]
  %s6 = inlined_call_operand.vmem [shape: f32[1,256], index: 6, kind: input, shape index: {}]
  %s7 = inlined_call_operand.vmem [shape: f32[1,256], index: 7, kind: input, shape index: {}]
  %s8 = inlined_call_operand.<no memory space> [shape: f32[1,1], index: 8, kind: input, shape index: {}]
  %s9 = inlined_call_operand.vmem [shape: f32[2,1,1], index: 9, kind: output, shape index: {}]
  %s10 = sld [smem:[#allocation0]]
  $region69: #{siamese_forward.1} parent=0
    _
  %s12 = ssub.s32 1, %s10
  %s13 = scalar_select 0, %s12, %s10
  %v14 = vstv %s8
  %15 = vst [vmem:[#allocation2] sm:$0x1] %v14
  loop: start=0, step=1, limit=4
  $region2: #{siamese_forward.1} parent=0 // loop_pre_header
    _
  $region3: #{siamese_forward.1} parent=0 // loop_header
    %s17 = sphi 0, %s21
    %p18 = scmp.ge.s32.totalorder %s17, 4
    %s27 = sphi 0, %s29
    %s30 = sphi 0, %s27
    %s31 = sphi 0, %s30
    %s47 = sphi 0, %s31
    %s51 = sphi 0, %s51
    %s53 = sphi 0, %s51
    %s54 = sphi 0, %s53
    %s68 = sphi 0, %s54
    %s72 = sphi 0, %s72
    %s74 = sphi 0, %s72
    %s75 = sphi 0, %s74
    %s89 = sphi 0, %s75
    %s93 = sphi 0, %s93
    %s95 = sphi 0, %s93
    %s96 = sphi 0, %s95
    %s110 = sphi 0, %s96
    %s114 = sphi 0, %s114
    %s116 = sphi 0, %s114
    %s117 = sphi 0, %s116
    %s131 = sphi 0, %s117
    %s135 = sphi 0, %s135
    %s137 = sphi 0, %s135
    %s138 = sphi 0, %s137
    %s152 = sphi 0, %s138
    %s156 = sphi 0, %s156
    %s158 = sphi 0, %s156
    %s159 = sphi 0, %s158
    %s173 = sphi 0, %s159
    %s177 = sphi 0, %s177
    %s179 = sphi 0, %s177
    %s180 = sphi 0, %s179
    %s194 = sphi 0, %s180
    %s198 = sphi 0, %s198
    %s200 = sphi 0, %s198
    %s201 = sphi 0, %s200
    %s215 = sphi 0, %s201
    %s221 = sphi 0, %s223
    %s224 = sphi 0, %s221
    %s225 = sphi 0, %s224
    %s241 = sphi 0, %s225
  $region4: #{siamese_forward.1} parent=0 // loop_header_branch
    %20 = sbr.rel (%p18) target = $region8
  $region5: #{siamese_forward.1} parent=0 // loop_body
    %s22 = ssub.s32 %s17, 1
    %s23 = ssub.s32 %s17, 2
    %s24 = sadd.s32 %s17, 1
    %s25 = ssub.s32 %s17, %s24
    %p26 = scmp.eq.s32.totalorder %s25, 0
    %s28 = sadd.s32 %s27, 1
    %s29 = scalar_select %p26, %s27, %s28
    %p32 = pneg %p26
    %p33 = scmp.eq.s32.totalorder %s17, 1
    %p34 = por %p32, %p33
    %p35 = scmp.ne.s32.totalorder %s27, %s30
    %p36 = scmp.eq.s32.totalorder %s17, 0
    %p37 = por %p35, %p36
    %p38 = scmp.ne.s32.totalorder %s27, %s30
    %p39 = scmp.eq.s32.totalorder %s22, 1
    %p40 = por %p38, %p39
    %p41 = scmp.ne.s32.totalorder %s30, %s31
    %p42 = scmp.eq.s32.totalorder %s22, 0
    %p43 = por %p41, %p42
    %p44 = scmp.ne.s32.totalorder %s30, %s31
    %p45 = scmp.eq.s32.totalorder %s23, 1
    %p46 = por %p44, %p45
    %p48 = scmp.ne.s32.totalorder %s31, %s47
    %p49 = scmp.eq.s32.totalorder %s23, 0
    %p50 = por %p48, %p49
    %s52 = sadd.s32 %s51, 1
    %p55 = scmp.eq.s32.totalorder %s17, 1
    %p56 = scmp.ne.s32.totalorder %s51, %s53
    %p57 = scmp.eq.s32.totalorder %s17, 0
    %p58 = por %p56, %p57
    %p59 = scmp.ne.s32.totalorder %s51, %s53
    %p60 = scmp.eq.s32.totalorder %s22, 1
    %p61 = por %p59, %p60
    %p62 = scmp.ne.s32.totalorder %s53, %s54
    %p63 = scmp.eq.s32.totalorder %s22, 0
    %p64 = por %p62, %p63
    %p65 = scmp.ne.s32.totalorder %s53, %s54
    %p66 = scmp.eq.s32.totalorder %s23, 1
    %p67 = por %p65, %p66
    %p69 = scmp.ne.s32.totalorder %s54, %s68
    %p70 = scmp.eq.s32.totalorder %s23, 0
    %p71 = por %p69, %p70
    %s73 = sadd.s32 %s72, 1
    %p76 = scmp.eq.s32.totalorder %s17, 1
    %p77 = scmp.ne.s32.totalorder %s72, %s74
    %p78 = scmp.eq.s32.totalorder %s17, 0
    %p79 = por %p77, %p78
    %p80 = scmp.ne.s32.totalorder %s72, %s74
    %p81 = scmp.eq.s32.totalorder %s22, 1
    %p82 = por %p80, %p81
    %p83 = scmp.ne.s32.totalorder %s74, %s75
    %p84 = scmp.eq.s32.totalorder %s22, 0
    %p85 = por %p83, %p84
    %p86 = scmp.ne.s32.totalorder %s74, %s75
    %p87 = scmp.eq.s32.totalorder %s23, 1
    %p88 = por %p86, %p87
    %p90 = scmp.ne.s32.totalorder %s75, %s89
    %p91 = scmp.eq.s32.totalorder %s23, 0
    %p92 = por %p90, %p91
    %s94 = sadd.s32 %s93, 1
    %p97 = scmp.eq.s32.totalorder %s17, 1
    %p98 = scmp.ne.s32.totalorder %s93, %s95
    %p99 = scmp.eq.s32.totalorder %s17, 0
    %p100 = por %p98, %p99
    %p101 = scmp.ne.s32.totalorder %s93, %s95
    %p102 = scmp.eq.s32.totalorder %s22, 1
    %p103 = por %p101, %p102
    %p104 = scmp.ne.s32.totalorder %s95, %s96
    %p105 = scmp.eq.s32.totalorder %s22, 0
    %p106 = por %p104, %p105
    %p107 = scmp.ne.s32.totalorder %s95, %s96
    %p108 = scmp.eq.s32.totalorder %s23, 1
    %p109 = por %p107, %p108
    %p111 = scmp.ne.s32.totalorder %s96, %s110
    %p112 = scmp.eq.s32.totalorder %s23, 0
    %p113 = por %p111, %p112
    %s115 = sadd.s32 %s114, 1
    %p118 = scmp.eq.s32.totalorder %s17, 1
    %p119 = scmp.ne.s32.totalorder %s114, %s116
    %p120 = scmp.eq.s32.totalorder %s17, 0
    %p121 = por %p119, %p120
    %p122 = scmp.ne.s32.totalorder %s114, %s116
    %p123 = scmp.eq.s32.totalorder %s22, 1
    %p124 = por %p122, %p123
    %p125 = scmp.ne.s32.totalorder %s116, %s117
    %p126 = scmp.eq.s32.totalorder %s22, 0
    %p127 = por %p125, %p126
    %p128 = scmp.ne.s32.totalorder %s116, %s117
    %p129 = scmp.eq.s32.totalorder %s23, 1
    %p130 = por %p128, %p129
    %p132 = scmp.ne.s32.totalorder %s117, %s131
    %p133 = scmp.eq.s32.totalorder %s23, 0
    %p134 = por %p132, %p133
    %s136 = sadd.s32 %s135, 1
    %p139 = scmp.eq.s32.totalorder %s17, 1
    %p140 = scmp.ne.s32.totalorder %s135, %s137
    %p141 = scmp.eq.s32.totalorder %s17, 0
    %p142 = por %p140, %p141
    %p143 = scmp.ne.s32.totalorder %s135, %s137
    %p144 = scmp.eq.s32.totalorder %s22, 1
    %p145 = por %p143, %p144
    %p146 = scmp.ne.s32.totalorder %s137, %s138
    %p147 = scmp.eq.s32.totalorder %s22, 0
    %p148 = por %p146, %p147
    %p149 = scmp.ne.s32.totalorder %s137, %s138
    %p150 = scmp.eq.s32.totalorder %s23, 1
    %p151 = por %p149, %p150
    %p153 = scmp.ne.s32.totalorder %s138, %s152
    %p154 = scmp.eq.s32.totalorder %s23, 0
    %p155 = por %p153, %p154
    %s157 = sadd.s32 %s156, 1
    %p160 = scmp.eq.s32.totalorder %s17, 1
    %p161 = scmp.ne.s32.totalorder %s156, %s158
    %p162 = scmp.eq.s32.totalorder %s17, 0
    %p163 = por %p161, %p162
    %p164 = scmp.ne.s32.totalorder %s156, %s158
    %p165 = scmp.eq.s32.totalorder %s22, 1
    %p166 = por %p164, %p165
    %p167 = scmp.ne.s32.totalorder %s158, %s159
    %p168 = scmp.eq.s32.totalorder %s22, 0
    %p169 = por %p167, %p168
    %p170 = scmp.ne.s32.totalorder %s158, %s159
    %p171 = scmp.eq.s32.totalorder %s23, 1
    %p172 = por %p170, %p171
    %p174 = scmp.ne.s32.totalorder %s159, %s173
    %p175 = scmp.eq.s32.totalorder %s23, 0
    %p176 = por %p174, %p175
    %s178 = sadd.s32 %s177, 1
    %p181 = scmp.eq.s32.totalorder %s17, 1
    %p182 = scmp.ne.s32.totalorder %s177, %s179
    %p183 = scmp.eq.s32.totalorder %s17, 0
    %p184 = por %p182, %p183
    %p185 = scmp.ne.s32.totalorder %s177, %s179
    %p186 = scmp.eq.s32.totalorder %s22, 1
    %p187 = por %p185, %p186
    %p188 = scmp.ne.s32.totalorder %s179, %s180
    %p189 = scmp.eq.s32.totalorder %s22, 0
    %p190 = por %p188, %p189
    %p191 = scmp.ne.s32.totalorder %s179, %s180
    %p192 = scmp.eq.s32.totalorder %s23, 1
    %p193 = por %p191, %p192
    %p195 = scmp.ne.s32.totalorder %s180, %s194
    %p196 = scmp.eq.s32.totalorder %s23, 0
    %p197 = por %p195, %p196
    %s199 = sadd.s32 %s198, 1
    %p202 = scmp.eq.s32.totalorder %s17, 1
    %p203 = scmp.ne.s32.totalorder %s198, %s200
    %p204 = scmp.eq.s32.totalorder %s17, 0
    %p205 = por %p203, %p204
    %p206 = scmp.ne.s32.totalorder %s198, %s200
    %p207 = scmp.eq.s32.totalorder %s22, 1
    %p208 = por %p206, %p207
    %p209 = scmp.ne.s32.totalorder %s200, %s201
    %p210 = scmp.eq.s32.totalorder %s22, 0
    %p211 = por %p209, %p210
    %p212 = scmp.ne.s32.totalorder %s200, %s201
    %p213 = scmp.eq.s32.totalorder %s23, 1
    %p214 = por %p212, %p213
    %p216 = scmp.ne.s32.totalorder %s201, %s215
    %p217 = scmp.eq.s32.totalorder %s23, 0
    %p218 = por %p216, %p217
    %s219 = ssub.s32 %s17, %s24
    %p220 = scmp.eq.s32.totalorder %s219, 0
    %s222 = sadd.s32 %s221, 1
    %s223 = scalar_select %p220, %s221, %s222
    %p226 = pneg %p220
    %p227 = scmp.eq.s32.totalorder %s17, 1
    %p228 = por %p226, %p227
    %p229 = scmp.ne.s32.totalorder %s221, %s224
    %p230 = scmp.eq.s32.totalorder %s17, 0
    %p231 = por %p229, %p230
    %p232 = scmp.ne.s32.totalorder %s221, %s224
    %p233 = scmp.eq.s32.totalorder %s22, 1
    %p234 = por %p232, %p233
    %p235 = scmp.ne.s32.totalorder %s224, %s225
    %p236 = scmp.eq.s32.totalorder %s22, 0
    %p237 = por %p235, %p236
    %p238 = scmp.ne.s32.totalorder %s224, %s225
    %p239 = scmp.eq.s32.totalorder %s23, 1
    %p240 = por %p238, %p239
    %p242 = scmp.ne.s32.totalorder %s225, %s241
    %p243 = scmp.eq.s32.totalorder %s23, 0
    %p244 = por %p242, %p243
    %p245 = scmp.le.s32.totalorder 1, %s17
    %p246 = scmp.lt.s32.totalorder %s17, 3
    %p247 = pnand %p245, %p246
    %p248 = pneg %p247
    // Predicated region
    $region9: #{siamese_forward.1} parent=5 // pred_check
      _
    $region10: #{siamese_forward.1} parent=5 // pred_check_branch
      %250 = sbr.rel (%p247) target = $region12
    $region11: #{siamese_forward.1} parent=5 // pred_region
      %s251 = ssub.s32 %s17, 1
      // Predicated region
      $region13: #{siamese_forward.1} parent=11 // pred_check
        %p252 = pneg %p64
      $region14: #{siamese_forward.1} parent=11 // pred_check_branch
        %254 = sbr.rel (%p252) target = $region16
      $region15: #{siamese_forward.1} parent=11 // pred_region
        _
      $region16: #{siamese_forward.1} parent=11 // pred_fallthru
        _
      // Predicated region
      $region17: #{siamese_forward.1} parent=11 // pred_check
        %p255 = pneg %p85
      $region18: #{siamese_forward.1} parent=11 // pred_check_branch
        %257 = sbr.rel (%p255) target = $region20
      $region19: #{siamese_forward.1} parent=11 // pred_region
        _
      $region20: #{siamese_forward.1} parent=11 // pred_fallthru
        _
      // Predicated region
      $region21: #{siamese_forward.1} parent=11 // pred_check
        %p258 = pneg %p106
      $region22: #{siamese_forward.1} parent=11 // pred_check_branch
        %260 = sbr.rel (%p258) target = $region24
      $region23: #{siamese_forward.1} parent=11 // pred_region
        _
      $region24: #{siamese_forward.1} parent=11 // pred_fallthru
        _
      // Predicated region
      $region25: #{siamese_forward.1} parent=11 // pred_check
        %p261 = pneg %p127
      $region26: #{siamese_forward.1} parent=11 // pred_check_branch
        %263 = sbr.rel (%p261) target = $region28
      $region27: #{siamese_forward.1} parent=11 // pred_region
        _
      $region28: #{siamese_forward.1} parent=11 // pred_fallthru
        _
      // Predicated region
      $region29: #{siamese_forward.1} parent=11 // pred_check
        %p264 = pneg %p148
      $region30: #{siamese_forward.1} parent=11 // pred_check_branch
        %266 = sbr.rel (%p264) target = $region32
      $region31: #{siamese_forward.1} parent=11 // pred_region
        _
      $region32: #{siamese_forward.1} parent=11 // pred_fallthru
        _
      // Predicated region
      $region33: #{siamese_forward.1} parent=11 // pred_check
        %p267 = pneg %p169
      $region34: #{siamese_forward.1} parent=11 // pred_check_branch
        %269 = sbr.rel (%p267) target = $region36
      $region35: #{siamese_forward.1} parent=11 // pred_region
        _
      $region36: #{siamese_forward.1} parent=11 // pred_fallthru
        _
      // Predicated region
      $region37: #{siamese_forward.1} parent=11 // pred_check
        %p270 = pneg %p190
      $region38: #{siamese_forward.1} parent=11 // pred_check_branch
        %272 = sbr.rel (%p270) target = $region40
      $region39: #{siamese_forward.1} parent=11 // pred_region
        _
      $region40: #{siamese_forward.1} parent=11 // pred_fallthru
        _
      // Predicated region
      $region41: #{siamese_forward.1} parent=11 // pred_check
        %p273 = pneg %p211
      $region42: #{siamese_forward.1} parent=11 // pred_check_branch
        %275 = sbr.rel (%p273) target = $region44
      $region43: #{siamese_forward.1} parent=11 // pred_region
        _
      $region44: #{siamese_forward.1} parent=11 // pred_fallthru
        _
    $region12: #{siamese_forward.1} parent=5 // pred_fallthru
      _
    %p276 = scmp.lt.s32.totalorder %s17, 2
    // Predicated region
    $region45: #{siamese_forward.1} parent=5 // pred_check
      %p277 = pneg %p276
    $region46: #{siamese_forward.1} parent=5 // pred_check_branch
      %279 = sbr.rel (%p277) target = $region48
    $region47: #{siamese_forward.1} parent=5 // pred_region
      // Predicated region
      $region49: #{siamese_forward.1} parent=47 // pred_check
        %p280 = pneg %p37
      $region50: #{siamese_forward.1} parent=47 // pred_check_branch
        %282 = sbr.rel (%p280) target = $region52
      $region51: #{siamese_forward.1} parent=47 // pred_region
        %s283 = smul.u32 2, %s17
        %p284 = scmp.lt.s32.totalorder %s283, 3
        %s285 = scalar_select %p284, %s283, 3
        %s286 = smul.addr %s285, 32
        %s287 = smul.addr %s286, 4
        %s288 = scalar_lea.vmem %s0, %s287
        %s289 = smul.u32 2, %s17
      $region52: #{siamese_forward.1} parent=47 // pred_fallthru
        _
    $region48: #{siamese_forward.1} parent=5 // pred_fallthru
      _
    %p290 = scmp.le.s32.totalorder 1, %s17
    %p291 = scmp.lt.s32.totalorder %s17, 3
    %p292 = pnand %p290, %p291
    %p293 = pneg %p292
    // Predicated region
    $region53: #{siamese_forward.1} parent=5 // pred_check
      _
    $region54: #{siamese_forward.1} parent=5 // pred_check_branch
      %295 = sbr.rel (%p292) target = $region56
    $region55: #{siamese_forward.1} parent=5 // pred_region
      %s296 = ssub.s32 %s17, 1
      %s297 = smul.u32 2, %s22
      %p298 = scmp.lt.s32.totalorder %s297, 3
      %s299 = scalar_select %p298, %s297, 3
      %s300 = smul.addr %s299, 32
      %s301 = smul.addr %s300, 4
      %s302 = scalar_lea.vmem %s0, %s301
      %p303 = pneg %p43
      %p304 = pneg %p40
      %p305 = pneg %p64
      %p306 = pneg %p61
      %p307 = pneg %p85
      %p308 = pneg %p82
      %p309 = pneg %p106
      %p310 = pneg %p103
      %p311 = pneg %p127
      %p312 = pneg %p124
      %p313 = pneg %p148
      %p314 = pneg %p145
      %p315 = pneg %p169
      %p316 = pneg %p166
      %p317 = pneg %p190
      %p318 = pneg %p187
      %p319 = pneg %p211
      %p320 = pneg %p208
      %p321 = pneg %p237
      %p322 = pneg %p234
      %p323 = scmp.lt.s32.totalorder %s22, 1
      %s324 = scalar_select %p323, %s22, 1
      %s325 = scalar_lea.vmem %s9, %s324
      %s326 = smul.u32 2, %s22
      %p327 = scmp.lt.s32.totalorder %s326, 3
      %s328 = scalar_select %p327, %s326, 3
      %s329 = smul.addr %s328, 32
      %s330 = smul.addr %s329, 4
      %s331 = scalar_lea.vmem %s0, %s330
      %s332 = smul.u32 2, %s22
      %p333 = scmp.lt.s32.totalorder %s22, 1
      %s334 = scalar_select %p333, %s22, 1
      %s335 = scalar_lea.vmem %s9, %s334
      %v337 = vld [vmem:[%s331] sm:$0xf]
      %v338 = vld [vmem:[%s331 + $0x4] sm:$0xf]
      %v339 = vld [vmem:[%s331 + $0x8] sm:$0xf]
      %v340 = vld [vmem:[%s331 + $0xc] sm:$0xf]
      %v341 = vld [vmem:[%s331 + $0x10] sm:$0xf]
      %v342 = vld [vmem:[%s331 + $0x14] sm:$0xf]
      %v343 = vld [vmem:[%s331 + $0x18] sm:$0xf]
      %v344 = vld [vmem:[%s331 + $0x1c] sm:$0xf]
      %v345 = vld [vmem:[%s331 + $0x20] sm:$0xf]
      %v346 = vld [vmem:[%s331 + $0x24] sm:$0xf]
      %v347 = vld [vmem:[%s331 + $0x28] sm:$0xf]
      %v348 = vld [vmem:[%s331 + $0x2c] sm:$0xf]
      %v349 = vld [vmem:[%s331 + $0x30] sm:$0xf]
      %v350 = vld [vmem:[%s331 + $0x34] sm:$0xf]
      %v351 = vld [vmem:[%s331 + $0x38] sm:$0xf]
      %v352 = vld [vmem:[%s331 + $0x3c] sm:$0xf]
      %v353 = vld [vmem:[%s331 + $0x40] sm:$0xf]
      %v354 = vld [vmem:[%s331 + $0x44] sm:$0xf]
      %v355 = vld [vmem:[%s331 + $0x48] sm:$0xf]
      %v356 = vld [vmem:[%s331 + $0x4c] sm:$0xf]
      %v357 = vld [vmem:[%s331 + $0x50] sm:$0xf]
      %v358 = vld [vmem:[%s331 + $0x54] sm:$0xf]
      %v359 = vld [vmem:[%s331 + $0x58] sm:$0xf]
      %v360 = vld [vmem:[%s331 + $0x5c] sm:$0xf]
      %v361 = vld [vmem:[%s331 + $0x60] sm:$0xf]
      %v362 = vld [vmem:[%s331 + $0x64] sm:$0xf]
      %v363 = vld [vmem:[%s331 + $0x68] sm:$0xf]
      %v364 = vld [vmem:[%s331 + $0x6c] sm:$0xf]
      %v365 = vld [vmem:[%s331 + $0x70] sm:$0xf]
      %v366 = vld [vmem:[%s331 + $0x74] sm:$0xf]
      %v367 = vld [vmem:[%s331 + $0x78] sm:$0xf]
      %v368 = vld [vmem:[%s331 + $0x7c] sm:$0xf]
      %v369 = vld [vmem:[%s331 + $0x80] sm:$0xf]
      %v370 = vld [vmem:[%s331 + $0x84] sm:$0xf]
      %v371 = vld [vmem:[%s331 + $0x88] sm:$0xf]
      %v372 = vld [vmem:[%s331 + $0x8c] sm:$0xf]
      %v373 = vld [vmem:[%s331 + $0x90] sm:$0xf]
      %v374 = vld [vmem:[%s331 + $0x94] sm:$0xf]
      %v375 = vld [vmem:[%s331 + $0x98] sm:$0xf]
      %v376 = vld [vmem:[%s331 + $0x9c] sm:$0xf]
      %v377 = vld [vmem:[%s331 + $0xa0] sm:$0xf]
      %v378 = vld [vmem:[%s331 + $0xa4] sm:$0xf]
      %v379 = vld [vmem:[%s331 + $0xa8] sm:$0xf]
      %v380 = vld [vmem:[%s331 + $0xac] sm:$0xf]
      %v381 = vld [vmem:[%s331 + $0xb0] sm:$0xf]
      %v382 = vld [vmem:[%s331 + $0xb4] sm:$0xf]
      %v383 = vld [vmem:[%s331 + $0xb8] sm:$0xf]
      %v384 = vld [vmem:[%s331 + $0xbc] sm:$0xf]
      %v385 = vld [vmem:[%s331 + $0xc0] sm:$0xf]
      %v386 = vld [vmem:[%s331 + $0xc4] sm:$0xf]
      %v387 = vld [vmem:[%s331 + $0xc8] sm:$0xf]
      %v388 = vld [vmem:[%s331 + $0xcc] sm:$0xf]
      %v389 = vld [vmem:[%s331 + $0xd0] sm:$0xf]
      %v390 = vld [vmem:[%s331 + $0xd4] sm:$0xf]
      %v391 = vld [vmem:[%s331 + $0xd8] sm:$0xf]
      %v392 = vld [vmem:[%s331 + $0xdc] sm:$0xf]
      %v393 = vld [vmem:[%s331 + $0xe0] sm:$0xf]
      %v394 = vld [vmem:[%s331 + $0xe4] sm:$0xf]
      %v395 = vld [vmem:[%s331 + $0xe8] sm:$0xf]
      %v396 = vld [vmem:[%s331 + $0xec] sm:$0xf]
      %v397 = vld [vmem:[%s331 + $0xf0] sm:$0xf]
      %v398 = vld [vmem:[%s331 + $0xf4] sm:$0xf]
      %v399 = vld [vmem:[%s331 + $0xf8] sm:$0xf]
      %v400 = vld [vmem:[%s331 + $0xfc] sm:$0xf]
      %v401 = vld [vmem:[%s1] sm:$0xf]
      %v402 = vld [vmem:[%s1 + $0x4] sm:$0xf]
      %v403 = vld [vmem:[%s1 + $0x8] sm:$0xf]
      %v404 = vld [vmem:[%s1 + $0xc] sm:$0xf]
      %v405 = vld [vmem:[%s1 + $0x10] sm:$0xf]
      %v406 = vld [vmem:[%s1 + $0x14] sm:$0xf]
      %v407 = vld [vmem:[%s1 + $0x18] sm:$0xf]
      %v408 = vld [vmem:[%s1 + $0x1c] sm:$0xf]
      %v473 = vunpack.c.l.b16 %v337
      %v474 = vunpack.c.l.b16 %v338
      %v475 = vunpack.c.l.b16 %v339
      %v476 = vunpack.c.l.b16 %v340
      %v477 = vunpack.c.l.b16 %v341
      %v478 = vunpack.c.l.b16 %v342
      %v479 = vunpack.c.l.b16 %v343
      %v480 = vunpack.c.l.b16 %v344
      %v481 = vunpack.c.l.b16 %v345
      %v482 = vunpack.c.l.b16 %v346
      %v483 = vunpack.c.l.b16 %v347
      %v484 = vunpack.c.l.b16 %v348
      %v485 = vunpack.c.l.b16 %v349
      %v486 = vunpack.c.l.b16 %v350
      %v487 = vunpack.c.l.b16 %v351
      %v488 = vunpack.c.l.b16 %v352
      %v489 = vunpack.c.l.b16 %v353
      %v490 = vunpack.c.l.b16 %v354
      %v491 = vunpack.c.l.b16 %v355
      %v492 = vunpack.c.l.b16 %v356
      %v493 = vunpack.c.l.b16 %v357
      %v494 = vunpack.c.l.b16 %v358
      %v495 = vunpack.c.l.b16 %v359
      %v496 = vunpack.c.l.b16 %v360
      %v497 = vunpack.c.l.b16 %v361
      %v498 = vunpack.c.l.b16 %v362
      %v499 = vunpack.c.l.b16 %v363
      %v500 = vunpack.c.l.b16 %v364
      %v501 = vunpack.c.l.b16 %v365
      %v502 = vunpack.c.l.b16 %v366
      %v503 = vunpack.c.l.b16 %v367
      %v504 = vunpack.c.l.b16 %v368
      %v505 = vunpack.c.l.b16 %v369
      %v506 = vunpack.c.l.b16 %v370
      %v507 = vunpack.c.l.b16 %v371
      %v508 = vunpack.c.l.b16 %v372
      %v509 = vunpack.c.l.b16 %v373
      %v510 = vunpack.c.l.b16 %v374
      %v511 = vunpack.c.l.b16 %v375
      %v512 = vunpack.c.l.b16 %v376
      %v513 = vunpack.c.l.b16 %v377
      %v514 = vunpack.c.l.b16 %v378
      %v515 = vunpack.c.l.b16 %v379
      %v516 = vunpack.c.l.b16 %v380
      %v517 = vunpack.c.l.b16 %v381
      %v518 = vunpack.c.l.b16 %v382
      %v519 = vunpack.c.l.b16 %v383
      %v520 = vunpack.c.l.b16 %v384
      %v521 = vunpack.c.l.b16 %v385
      %v522 = vunpack.c.l.b16 %v386
      %v523 = vunpack.c.l.b16 %v387
      %v524 = vunpack.c.l.b16 %v388
      %v525 = vunpack.c.l.b16 %v389
      %v526 = vunpack.c.l.b16 %v390
      %v527 = vunpack.c.l.b16 %v391
      %v528 = vunpack.c.l.b16 %v392
      %v529 = vunpack.c.l.b16 %v393
      %v530 = vunpack.c.l.b16 %v394
      %v531 = vunpack.c.l.b16 %v395
      %v532 = vunpack.c.l.b16 %v396
      %v533 = vunpack.c.l.b16 %v397
      %v534 = vunpack.c.l.b16 %v398
      %v535 = vunpack.c.l.b16 %v399
      %v536 = vunpack.c.l.b16 %v400
      %v537 = vpack.c.b16 %v474, %v473
      %v538 = vpack.c.b16 %v476, %v475
      %v539 = vpack.c.b16 %v478, %v477
      %v540 = vpack.c.b16 %v480, %v479
      %v541 = vpack.c.b16 %v482, %v481
      %v542 = vpack.c.b16 %v484, %v483
      %v543 = vpack.c.b16 %v486, %v485
      %v544 = vpack.c.b16 %v488, %v487
      %v545 = vpack.c.b16 %v490, %v489
      %v546 = vpack.c.b16 %v492, %v491
      %v547 = vpack.c.b16 %v494, %v493
      %v548 = vpack.c.b16 %v496, %v495
      %v549 = vpack.c.b16 %v498, %v497
      %v550 = vpack.c.b16 %v500, %v499
      %v551 = vpack.c.b16 %v502, %v501
      %v552 = vpack.c.b16 %v504, %v503
      %v553 = vpack.c.b16 %v506, %v505
      %v554 = vpack.c.b16 %v508, %v507
      %v555 = vpack.c.b16 %v510, %v509
      %v556 = vpack.c.b16 %v512, %v511
      %v557 = vpack.c.b16 %v514, %v513
      %v558 = vpack.c.b16 %v516, %v515
      %v559 = vpack.c.b16 %v518, %v517
      %v560 = vpack.c.b16 %v520, %v519
      %v561 = vpack.c.b16 %v522, %v521
      %v562 = vpack.c.b16 %v524, %v523
      %v563 = vpack.c.b16 %v526, %v525
      %v564 = vpack.c.b16 %v528, %v527
      %v565 = vpack.c.b16 %v530, %v529
      %v566 = vpack.c.b16 %v532, %v531
      %v567 = vpack.c.b16 %v534, %v533
      %v568 = vpack.c.b16 %v536, %v535
      %v577 = vunpack.c.l.b16 %v401
      %v578 = vunpack.c.l.b16 %v402
      %v579 = vunpack.c.l.b16 %v403
      %v580 = vunpack.c.l.b16 %v404
      %v581 = vunpack.c.l.b16 %v405
      %v582 = vunpack.c.l.b16 %v406
      %v583 = vunpack.c.l.b16 %v407
      %v584 = vunpack.c.l.b16 %v408
      %v585 = vpack.c.b16 %v578, %v577
      %v586 = vpack.c.b16 %v580, %v579
      %v587 = vpack.c.b16 %v582, %v581
      %v588 = vpack.c.b16 %v584, %v583
      %vm593 = vcmask 523264
      %v595 = vsel %vm593, %v537, 0
      %v598 = vsel %vm593, %v538, 0
      %v601 = vsel %vm593, %v539, 0
      %v604 = vsel %vm593, %v540, 0
      %v607 = vsel %vm593, %v541, 0
      %v610 = vsel %vm593, %v542, 0
      %v613 = vsel %vm593, %v543, 0
      %v616 = vsel %vm593, %v544, 0
      %v619 = vsel %vm593, %v545, 0
      %v622 = vsel %vm593, %v546, 0
      %v625 = vsel %vm593, %v547, 0
      %v628 = vsel %vm593, %v548, 0
      %v631 = vsel %vm593, %v549, 0
      %v634 = vsel %vm593, %v550, 0
      %v637 = vsel %vm593, %v551, 0
      %v640 = vsel %vm593, %v552, 0
      %v643 = vsel %vm593, %v553, 0
      %v646 = vsel %vm593, %v554, 0
      %v649 = vsel %vm593, %v555, 0
      %v652 = vsel %vm593, %v556, 0
      %v655 = vsel %vm593, %v557, 0
      %v658 = vsel %vm593, %v558, 0
      %v661 = vsel %vm593, %v559, 0
      %v664 = vsel %vm593, %v560, 0
      %v667 = vsel %vm593, %v561, 0
      %v670 = vsel %vm593, %v562, 0
      %v673 = vsel %vm593, %v563, 0
      %v676 = vsel %vm593, %v564, 0
      %v679 = vsel %vm593, %v565, 0
      %v682 = vsel %vm593, %v566, 0
      %v685 = vsel %vm593, %v567, 0
      %v688 = vsel %vm593, %v568, 0
      %690 = vmatprep.subr.bf16.mxu0 0
      %691 = vmatpush1.bf16.msra.mxu0 %v585
      %692 = vmatprep.subr.bf16.mxu0 0
      %693 = vmatpush1.bf16.msra.mxu0 %v586
      %694 = vmatprep.subr.bf16.mxu0 0
      %695 = vmatpush1.bf16.msra.mxu0 %v587
      %696 = vmatprep.subr.bf16.mxu0 0
      %697 = vmatpush1.bf16.msra.mxu0 %v588
      %698 = vmatprep.subr.bf16.mxu0 0
      %699 = vmatpush1.bf16.msra.mxu0 0
      %700 = vmatprep.subr.bf16.mxu0 0
      %701 = vmatpush1.bf16.msra.mxu0 0
      %702 = vmatprep.subr.bf16.mxu0 0
      %703 = vmatpush1.bf16.msra.mxu0 0
      %704 = vmatprep.subr.bf16.mxu0 0
      %705 = vmatpush1.bf16.msra.mxu0 0
      %706 = vmatprep.subr.bf16.mxu0 0
      %707 = vmatpush1.bf16.msra.mxu0 0
      %708 = vmatprep.subr.bf16.mxu0 0
      %709 = vmatpush1.bf16.msra.mxu0 0
      %710 = vmatprep.subr.bf16.mxu0 0
      %711 = vmatpush1.bf16.msra.mxu0 0
      %712 = vmatprep.subr.bf16.mxu0 0
      %713 = vmatpush1.bf16.msra.mxu0 0
      %714 = vmatprep.subr.bf16.mxu0 0
      %715 = vmatpush1.bf16.msra.mxu0 0
      %716 = vmatprep.subr.bf16.mxu0 0
      %717 = vmatpush1.bf16.msra.mxu0 0
      %718 = vmatprep.subr.bf16.mxu0 0
      %719 = vmatpush1.bf16.msra.mxu0 0
      %720 = vmatprep.subr.bf16.mxu0 0
      %721 = vmatpush1.bf16.msra.mxu0 0
      %722 = vmatprep.mubr.bf16.mxu0 0
      %723 = vmatmul.mubr.bf16.gmra.mrb[0].mxu0 %v595
      %v724 = vpop.f32.mrb[0].mxu0
      %v725 = vadd.f32 0.0, %v724
      %v726 = vpop.f32.mrb[0].mxu0
      %v727 = vpop.f32.mrb[0].mxu0
      %v728 = vadd.f32 0.0, %v727
      %v729 = vpop.f32.mrb[0].mxu0
      %730 = vmatprep.mubr.bf16.mxu0 0
      %731 = vmatmul.mubr.bf16.gmra.mrb[0].mxu0 %v598
      %v732 = vpop.f32.mrb[0].mxu0
      %v733 = vadd.f32 0.0, %v732
      %v734 = vpop.f32.mrb[0].mxu0
      %v735 = vpop.f32.mrb[0].mxu0
      %v736 = vadd.f32 0.0, %v735
      %v737 = vpop.f32.mrb[0].mxu0
      %738 = vmatprep.mubr.bf16.mxu0 0
      %739 = vmatmul.mubr.bf16.gmra.mrb[0].mxu0 %v601
      %v740 = vpop.f32.mrb[0].mxu0
      %v741 = vadd.f32 0.0, %v740
      %v742 = vpop.f32.mrb[0].mxu0
      %v743 = vpop.f32.mrb[0].mxu0
      %v744 = vadd.f32 0.0, %v743
      %v745 = vpop.f32.mrb[0].mxu0
      %746 = vmatprep.mubr.bf16.mxu0 0
      %747 = vmatmul.mubr.bf16.gmra.mrb[0].mxu0 %v604
      %v748 = vpop.f32.mrb[0].mxu0
      %v749 = vadd.f32 0.0, %v748
      %v750 = vpop.f32.mrb[0].mxu0
      %v751 = vpop.f32.mrb[0].mxu0
      %v752 = vadd.f32 0.0, %v751
      %v753 = vpop.f32.mrb[0].mxu0
      %754 = vmatprep.mubr.bf16.mxu0 0
      %755 = vmatmul.mubr.bf16.gmra.mrb[0].mxu0 %v607
      %v756 = vpop.f32.mrb[0].mxu0
      %v757 = vadd.f32 0.0, %v756
      %v758 = vpop.f32.mrb[0].mxu0
      %v759 = vpop.f32.mrb[0].mxu0
      %v760 = vadd.f32 0.0, %v759
      %v761 = vpop.f32.mrb[0].mxu0
      %762 = vmatprep.mubr.bf16.mxu0 0
      %763 = vmatmul.mubr.bf16.gmra.mrb[0].mxu0 %v610
      %v764 = vpop.f32.mrb[0].mxu0
      %v765 = vadd.f32 0.0, %v764
      %v766 = vpop.f32.mrb[0].mxu0
      %v767 = vpop.f32.mrb[0].mxu0
      %v768 = vadd.f32 0.0, %v767
      %v769 = vpop.f32.mrb[0].mxu0
      %770 = vmatprep.mubr.bf16.mxu0 0
      %771 = vmatmul.mubr.bf16.gmra.mrb[0].mxu0 %v613
      %v772 = vpop.f32.mrb[0].mxu0
      %v773 = vadd.f32 0.0, %v772
      %v774 = vpop.f32.mrb[0].mxu0
      %v775 = vpop.f32.mrb[0].mxu0
      %v776 = vadd.f32 0.0, %v775
      %v777 = vpop.f32.mrb[0].mxu0
      %778 = vmatprep.mubr.bf16.mxu0 0
      %779 = vmatmul.mubr.bf16.gmra.mrb[0].mxu0 %v616
      %v780 = vpop.f32.mrb[0].mxu0
      %v781 = vadd.f32 0.0, %v780
      %v782 = vpop.f32.mrb[0].mxu0
      %v783 = vpop.f32.mrb[0].mxu0
      %v784 = vadd.f32 0.0, %v783
      %v785 = vpop.f32.mrb[0].mxu0
      %786 = vmatprep.mubr.bf16.mxu0 0
      %787 = vmatmul.mubr.bf16.gmra.mrb[0].mxu0 %v619
      %v788 = vpop.f32.mrb[0].mxu0
      %v789 = vadd.f32 0.0, %v788
      %v790 = vpop.f32.mrb[0].mxu0
      %v791 = vpop.f32.mrb[0].mxu0
      %v792 = vadd.f32 0.0, %v791
      %v793 = vpop.f32.mrb[0].mxu0
      %794 = vmatprep.mubr.bf16.mxu0 0
      %795 = vmatmul.mubr.bf16.gmra.mrb[0].mxu0 %v622
      %v796 = vpop.f32.mrb[0].mxu0
      %v797 = vadd.f32 0.0, %v796
      %v798 = vpop.f32.mrb[0].mxu0
      %v799 = vpop.f32.mrb[0].mxu0
      %v800 = vadd.f32 0.0, %v799
      %v801 = vpop.f32.mrb[0].mxu0
      %802 = vmatprep.mubr.bf16.mxu0 0
      %803 = vmatmul.mubr.bf16.gmra.mrb[0].mxu0 %v625
      %v804 = vpop.f32.mrb[0].mxu0
      %v805 = vadd.f32 0.0, %v804
      %v806 = vpop.f32.mrb[0].mxu0
      %v807 = vpop.f32.mrb[0].mxu0
      %v808 = vadd.f32 0.0, %v807
      %v809 = vpop.f32.mrb[0].mxu0
      %810 = vmatprep.mubr.bf16.mxu0 0
      %811 = vmatmul.mubr.bf16.gmra.mrb[0].mxu0 %v628
      %v812 = vpop.f32.mrb[0].mxu0
      %v813 = vadd.f32 0.0, %v812
      %v814 = vpop.f32.mrb[0].mxu0
      %v815 = vpop.f32.mrb[0].mxu0
      %v816 = vadd.f32 0.0, %v815
      %v817 = vpop.f32.mrb[0].mxu0
      %818 = vmatprep.mubr.bf16.mxu0 0
      %819 = vmatmul.mubr.bf16.gmra.mrb[0].mxu0 %v631
      %v820 = vpop.f32.mrb[0].mxu0
      %v821 = vadd.f32 0.0, %v820
      %v822 = vpop.f32.mrb[0].mxu0
      %v823 = vpop.f32.mrb[0].mxu0
      %v824 = vadd.f32 0.0, %v823
      %v825 = vpop.f32.mrb[0].mxu0
      %826 = vmatprep.mubr.bf16.mxu0 0
      %827 = vmatmul.mubr.bf16.gmra.mrb[0].mxu0 %v634
      %v828 = vpop.f32.mrb[0].mxu0
      %v829 = vadd.f32 0.0, %v828
      %v830 = vpop.f32.mrb[0].mxu0
      %v831 = vpop.f32.mrb[0].mxu0
      %v832 = vadd.f32 0.0, %v831
      %v833 = vpop.f32.mrb[0].mxu0
      %834 = vmatprep.mubr.bf16.mxu0 0
      %835 = vmatmul.mubr.bf16.gmra.mrb[0].mxu0 %v637
      %v836 = vpop.f32.mrb[0].mxu0
      %v837 = vadd.f32 0.0, %v836
      %v838 = vpop.f32.mrb[0].mxu0
      %v839 = vpop.f32.mrb[0].mxu0
      %v840 = vadd.f32 0.0, %v839
      %v841 = vpop.f32.mrb[0].mxu0
      %842 = vmatprep.mubr.bf16.mxu0 0
      %843 = vmatmul.mubr.bf16.gmra.mrb[0].mxu0 %v640
      %v844 = vpop.f32.mrb[0].mxu0
      %v845 = vadd.f32 0.0, %v844
      %v846 = vpop.f32.mrb[0].mxu0
      %v847 = vpop.f32.mrb[0].mxu0
      %v848 = vadd.f32 0.0, %v847
      %v849 = vpop.f32.mrb[0].mxu0
      %850 = vmatprep.mubr.bf16.mxu0 0
      %851 = vmatmul.mubr.bf16.gmra.mrb[0].mxu0 %v643
      %v852 = vpop.f32.mrb[0].mxu0
      %v853 = vadd.f32 0.0, %v852
      %v854 = vpop.f32.mrb[0].mxu0
      %v855 = vpop.f32.mrb[0].mxu0
      %v856 = vadd.f32 0.0, %v855
      %v857 = vpop.f32.mrb[0].mxu0
      %858 = vmatprep.mubr.bf16.mxu0 0
      %859 = vmatmul.mubr.bf16.gmra.mrb[0].mxu0 %v646
      %v860 = vpop.f32.mrb[0].mxu0
      %v861 = vadd.f32 0.0, %v860
      %v862 = vpop.f32.mrb[0].mxu0
      %v863 = vpop.f32.mrb[0].mxu0
      %v864 = vadd.f32 0.0, %v863
      %v865 = vpop.f32.mrb[0].mxu0
      %866 = vmatprep.mubr.bf16.mxu0 0
      %867 = vmatmul.mubr.bf16.gmra.mrb[0].mxu0 %v649
      %v868 = vpop.f32.mrb[0].mxu0
      %v869 = vadd.f32 0.0, %v868
      %v870 = vpop.f32.mrb[0].mxu0
      %v871 = vpop.f32.mrb[0].mxu0
      %v872 = vadd.f32 0.0, %v871
      %v873 = vpop.f32.mrb[0].mxu0
      %874 = vmatprep.mubr.bf16.mxu0 0
      %875 = vmatmul.mubr.bf16.gmra.mrb[0].mxu0 %v652
      %v876 = vpop.f32.mrb[0].mxu0
      %v877 = vadd.f32 0.0, %v876
      %v878 = vpop.f32.mrb[0].mxu0
      %v879 = vpop.f32.mrb[0].mxu0
      %v880 = vadd.f32 0.0, %v879
      %v881 = vpop.f32.mrb[0].mxu0
      %882 = vmatprep.mubr.bf16.mxu0 0
      %883 = vmatmul.mubr.bf16.gmra.mrb[0].mxu0 %v655
      %v884 = vpop.f32.mrb[0].mxu0
      %v885 = vadd.f32 0.0, %v884
      %v886 = vpop.f32.mrb[0].mxu0
      %v887 = vpop.f32.mrb[0].mxu0
      %v888 = vadd.f32 0.0, %v887
      %v889 = vpop.f32.mrb[0].mxu0
      %890 = vmatprep.mubr.bf16.mxu0 0
      %891 = vmatmul.mubr.bf16.gmra.mrb[0].mxu0 %v658
      %v892 = vpop.f32.mrb[0].mxu0
      %v893 = vadd.f32 0.0, %v892
      %v894 = vpop.f32.mrb[0].mxu0
      %v895 = vpop.f32.mrb[0].mxu0
      %v896 = vadd.f32 0.0, %v895
      %v897 = vpop.f32.mrb[0].mxu0
      %898 = vmatprep.mubr.bf16.mxu0 0
      %899 = vmatmul.mubr.bf16.gmra.mrb[0].mxu0 %v661
      %v900 = vpop.f32.mrb[0].mxu0
      %v901 = vadd.f32 0.0, %v900
      %v902 = vpop.f32.mrb[0].mxu0
      %v903 = vpop.f32.mrb[0].mxu0
      %v904 = vadd.f32 0.0, %v903
      %v905 = vpop.f32.mrb[0].mxu0
      %906 = vmatprep.mubr.bf16.mxu0 0
      %907 = vmatmul.mubr.bf16.gmra.mrb[0].mxu0 %v664
      %v908 = vpop.f32.mrb[0].mxu0
      %v909 = vadd.f32 0.0, %v908
      %v910 = vpop.f32.mrb[0].mxu0
      %v911 = vpop.f32.mrb[0].mxu0
      %v912 = vadd.f32 0.0, %v911
      %v913 = vpop.f32.mrb[0].mxu0
      %914 = vmatprep.mubr.bf16.mxu0 0
      %915 = vmatmul.mubr.bf16.gmra.mrb[0].mxu0 %v667
      %v916 = vpop.f32.mrb[0].mxu0
      %v917 = vadd.f32 0.0, %v916
      %v918 = vpop.f32.mrb[0].mxu0
      %v919 = vpop.f32.mrb[0].mxu0
      %v920 = vadd.f32 0.0, %v919
      %v921 = vpop.f32.mrb[0].mxu0
      %922 = vmatprep.mubr.bf16.mxu0 0
      %923 = vmatmul.mubr.bf16.gmra.mrb[0].mxu0 %v670
      %v924 = vpop.f32.mrb[0].mxu0
      %v925 = vadd.f32 0.0, %v924
      %v926 = vpop.f32.mrb[0].mxu0
      %v927 = vpop.f32.mrb[0].mxu0
      %v928 = vadd.f32 0.0, %v927
      %v929 = vpop.f32.mrb[0].mxu0
      %930 = vmatprep.mubr.bf16.mxu0 0
      %931 = vmatmul.mubr.bf16.gmra.mrb[0].mxu0 %v673
      %v932 = vpop.f32.mrb[0].mxu0
      %v933 = vadd.f32 0.0, %v932
      %v934 = vpop.f32.mrb[0].mxu0
      %v935 = vpop.f32.mrb[0].mxu0
      %v936 = vadd.f32 0.0, %v935
      %v937 = vpop.f32.mrb[0].mxu0
      %938 = vmatprep.mubr.bf16.mxu0 0
      %939 = vmatmul.mubr.bf16.gmra.mrb[0].mxu0 %v676
      %v940 = vpop.f32.mrb[0].mxu0
      %v941 = vadd.f32 0.0, %v940
      %v942 = vpop.f32.mrb[0].mxu0
      %v943 = vpop.f32.mrb[0].mxu0
      %v944 = vadd.f32 0.0, %v943
      %v945 = vpop.f32.mrb[0].mxu0
      %946 = vmatprep.mubr.bf16.mxu0 0
      %947 = vmatmul.mubr.bf16.gmra.mrb[0].mxu0 %v679
      %v948 = vpop.f32.mrb[0].mxu0
      %v949 = vadd.f32 0.0, %v948
      %v950 = vpop.f32.mrb[0].mxu0
      %v951 = vpop.f32.mrb[0].mxu0
      %v952 = vadd.f32 0.0, %v951
      %v953 = vpop.f32.mrb[0].mxu0
      %954 = vmatprep.mubr.bf16.mxu0 0
      %955 = vmatmul.mubr.bf16.gmra.mrb[0].mxu0 %v682
      %v956 = vpop.f32.mrb[0].mxu0
      %v957 = vadd.f32 0.0, %v956
      %v958 = vpop.f32.mrb[0].mxu0
      %v959 = vpop.f32.mrb[0].mxu0
      %v960 = vadd.f32 0.0, %v959
      %v961 = vpop.f32.mrb[0].mxu0
      %962 = vmatprep.mubr.bf16.mxu0 0
      %963 = vmatmul.mubr.bf16.gmra.mrb[0].mxu0 %v685
      %v964 = vpop.f32.mrb[0].mxu0
      %v965 = vadd.f32 0.0, %v964
      %v966 = vpop.f32.mrb[0].mxu0
      %v967 = vpop.f32.mrb[0].mxu0
      %v968 = vadd.f32 0.0, %v967
      %v969 = vpop.f32.mrb[0].mxu0
      %970 = vmatprep.mubr.bf16.mxu0 0
      %971 = vmatmul.mubr.bf16.gmra.mrb[0].mxu0 %v688
      %v972 = vpop.f32.mrb[0].mxu0
      %v973 = vadd.f32 0.0, %v972
      %v974 = vpop.f32.mrb[0].mxu0
      %v975 = vpop.f32.mrb[0].mxu0
      %v976 = vadd.f32 0.0, %v975
      %v977 = vpop.f32.mrb[0].mxu0
      %978 = vdwg.mxu0
      %v979 = vmax.f32 %v725, 0.0
      %v980 = vmax.f32 %v728, 0.0
      %v981 = vmax.f32 %v733, 0.0
      %v982 = vmax.f32 %v736, 0.0
      %v983 = vmax.f32 %v741, 0.0
      %v984 = vmax.f32 %v744, 0.0
      %v985 = vmax.f32 %v749, 0.0
      %v986 = vmax.f32 %v752, 0.0
      %v987 = vmax.f32 %v757, 0.0
      %v988 = vmax.f32 %v760, 0.0
      %v989 = vmax.f32 %v765, 0.0
      %v990 = vmax.f32 %v768, 0.0
      %v991 = vmax.f32 %v773, 0.0
      %v992 = vmax.f32 %v776, 0.0
      %v993 = vmax.f32 %v781, 0.0
      %v994 = vmax.f32 %v784, 0.0
      %v995 = vmax.f32 %v789, 0.0
      %v996 = vmax.f32 %v792, 0.0
      %v997 = vmax.f32 %v797, 0.0
      %v998 = vmax.f32 %v800, 0.0
      %v999 = vmax.f32 %v805, 0.0
      %v1000 = vmax.f32 %v808, 0.0
      %v1001 = vmax.f32 %v813, 0.0
      %v1002 = vmax.f32 %v816, 0.0
      %v1003 = vmax.f32 %v821, 0.0
      %v1004 = vmax.f32 %v824, 0.0
      %v1005 = vmax.f32 %v829, 0.0
      %v1006 = vmax.f32 %v832, 0.0
      %v1007 = vmax.f32 %v837, 0.0
      %v1008 = vmax.f32 %v840, 0.0
      %v1009 = vmax.f32 %v845, 0.0
      %v1010 = vmax.f32 %v848, 0.0
      %v1011 = vmax.f32 %v853, 0.0
      %v1012 = vmax.f32 %v856, 0.0
      %v1013 = vmax.f32 %v861, 0.0
      %v1014 = vmax.f32 %v864, 0.0
      %v1015 = vmax.f32 %v869, 0.0
      %v1016 = vmax.f32 %v872, 0.0
      %v1017 = vmax.f32 %v877, 0.0
      %v1018 = vmax.f32 %v880, 0.0
      %v1019 = vmax.f32 %v885, 0.0
      %v1020 = vmax.f32 %v888, 0.0
      %v1021 = vmax.f32 %v893, 0.0
      %v1022 = vmax.f32 %v896, 0.0
      %v1023 = vmax.f32 %v901, 0.0
      %v1024 = vmax.f32 %v904, 0.0
      %v1025 = vmax.f32 %v909, 0.0
      %v1026 = vmax.f32 %v912, 0.0
      %v1027 = vmax.f32 %v917, 0.0
      %v1028 = vmax.f32 %v920, 0.0
      %v1029 = vmax.f32 %v925, 0.0
      %v1030 = vmax.f32 %v928, 0.0
      %v1031 = vmax.f32 %v933, 0.0
      %v1032 = vmax.f32 %v936, 0.0
      %v1033 = vmax.f32 %v941, 0.0
      %v1034 = vmax.f32 %v944, 0.0
      %v1035 = vmax.f32 %v949, 0.0
      %v1036 = vmax.f32 %v952, 0.0
      %v1037 = vmax.f32 %v957, 0.0
      %v1038 = vmax.f32 %v960, 0.0
      %v1039 = vmax.f32 %v965, 0.0
      %v1040 = vmax.f32 %v968, 0.0
      %v1041 = vmax.f32 %v973, 0.0
      %v1042 = vmax.f32 %v976, 0.0
      %v1043 = vsel %vm593, %v979, 0.0
      %v1044 = vsel %vm593, %v980, 0.0
      %v1045 = vadd.f32 %v1043, %v1044
      %v1046 = vsel %vm593, %v981, 0.0
      %v1047 = vadd.f32 %v1045, %v1046
      %v1048 = vsel %vm593, %v982, 0.0
      %v1049 = vadd.f32 %v1047, %v1048
      %v1050 = vsel %vm593, %v983, 0.0
      %v1051 = vadd.f32 %v1049, %v1050
      %v1052 = vsel %vm593, %v984, 0.0
      %v1053 = vadd.f32 %v1051, %v1052
      %v1054 = vsel %vm593, %v985, 0.0
      %v1055 = vadd.f32 %v1053, %v1054
      %v1056 = vsel %vm593, %v986, 0.0
      %v1057 = vadd.f32 %v1055, %v1056
      %v1058 = vsel %vm593, %v987, 0.0
      %v1059 = vadd.f32 %v1057, %v1058
      %v1060 = vsel %vm593, %v988, 0.0
      %v1061 = vadd.f32 %v1059, %v1060
      %v1062 = vsel %vm593, %v989, 0.0
      %v1063 = vadd.f32 %v1061, %v1062
      %v1064 = vsel %vm593, %v990, 0.0
      %v1065 = vadd.f32 %v1063, %v1064
      %v1066 = vsel %vm593, %v991, 0.0
      %v1067 = vadd.f32 %v1065, %v1066
      %v1068 = vsel %vm593, %v992, 0.0
      %v1069 = vadd.f32 %v1067, %v1068
      %v1070 = vsel %vm593, %v993, 0.0
      %v1071 = vadd.f32 %v1069, %v1070
      %v1072 = vsel %vm593, %v994, 0.0
      %v1073 = vadd.f32 %v1071, %v1072
      %v1074 = vsel %vm593, %v995, 0.0
      %v1075 = vadd.f32 %v1073, %v1074
      %v1076 = vsel %vm593, %v996, 0.0
      %v1077 = vadd.f32 %v1075, %v1076
      %v1078 = vsel %vm593, %v997, 0.0
      %v1079 = vadd.f32 %v1077, %v1078
      %v1080 = vsel %vm593, %v998, 0.0
      %v1081 = vadd.f32 %v1079, %v1080
      %v1082 = vsel %vm593, %v999, 0.0
      %v1083 = vadd.f32 %v1081, %v1082
      %v1084 = vsel %vm593, %v1000, 0.0
      %v1085 = vadd.f32 %v1083, %v1084
      %v1086 = vsel %vm593, %v1001, 0.0
      %v1087 = vadd.f32 %v1085, %v1086
      %v1088 = vsel %vm593, %v1002, 0.0
      %v1089 = vadd.f32 %v1087, %v1088
      %v1090 = vsel %vm593, %v1003, 0.0
      %v1091 = vadd.f32 %v1089, %v1090
      %v1092 = vsel %vm593, %v1004, 0.0
      %v1093 = vadd.f32 %v1091, %v1092
      %v1094 = vsel %vm593, %v1005, 0.0
      %v1095 = vadd.f32 %v1093, %v1094
      %v1096 = vsel %vm593, %v1006, 0.0
      %v1097 = vadd.f32 %v1095, %v1096
      %v1098 = vsel %vm593, %v1007, 0.0
      %v1099 = vadd.f32 %v1097, %v1098
      %v1100 = vsel %vm593, %v1008, 0.0
      %v1101 = vadd.f32 %v1099, %v1100
      %v1102 = vsel %vm593, %v1009, 0.0
      %v1103 = vadd.f32 %v1101, %v1102
      %v1104 = vsel %vm593, %v1010, 0.0
      %v1105 = vadd.f32 %v1103, %v1104
      %v1106 = vrot.slane %v1105, 4
      %v1107 = vadd.f32 %v1105, %v1106
      %v1108 = vrot.slane %v1107, 2
      %v1109 = vadd.f32 %v1107, %v1108
      %v1110 = vrot.slane %v1109, 1
      %v1111 = vadd.f32 %v1109, %v1110
      %v1112 = vsel %vm593, %v1011, 0.0
      %v1113 = vsel %vm593, %v1012, 0.0
      %v1114 = vadd.f32 %v1112, %v1113
      %v1115 = vsel %vm593, %v1013, 0.0
      %v1116 = vadd.f32 %v1114, %v1115
      %v1117 = vsel %vm593, %v1014, 0.0
      %v1118 = vadd.f32 %v1116, %v1117
      %v1119 = vsel %vm593, %v1015, 0.0
      %v1120 = vadd.f32 %v1118, %v1119
      %v1121 = vsel %vm593, %v1016, 0.0
      %v1122 = vadd.f32 %v1120, %v1121
      %v1123 = vsel %vm593, %v1017, 0.0
      %v1124 = vadd.f32 %v1122, %v1123
      %v1125 = vsel %vm593, %v1018, 0.0
      %v1126 = vadd.f32 %v1124, %v1125
      %v1127 = vsel %vm593, %v1019, 0.0
      %v1128 = vadd.f32 %v1126, %v1127
      %v1129 = vsel %vm593, %v1020, 0.0
      %v1130 = vadd.f32 %v1128, %v1129
      %v1131 = vsel %vm593, %v1021, 0.0
      %v1132 = vadd.f32 %v1130, %v1131
      %v1133 = vsel %vm593, %v1022, 0.0
      %v1134 = vadd.f32 %v1132, %v1133
      %v1135 = vsel %vm593, %v1023, 0.0
      %v1136 = vadd.f32 %v1134, %v1135
      %v1137 = vsel %vm593, %v1024, 0.0
      %v1138 = vadd.f32 %v1136, %v1137
      %v1139 = vsel %vm593, %v1025, 0.0
      %v1140 = vadd.f32 %v1138, %v1139
      %v1141 = vsel %vm593, %v1026, 0.0
      %v1142 = vadd.f32 %v1140, %v1141
      %v1143 = vsel %vm593, %v1027, 0.0
      %v1144 = vadd.f32 %v1142, %v1143
      %v1145 = vsel %vm593, %v1028, 0.0
      %v1146 = vadd.f32 %v1144, %v1145
      %v1147 = vsel %vm593, %v1029, 0.0
      %v1148 = vadd.f32 %v1146, %v1147
      %v1149 = vsel %vm593, %v1030, 0.0
      %v1150 = vadd.f32 %v1148, %v1149
      %v1151 = vsel %vm593, %v1031, 0.0
      %v1152 = vadd.f32 %v1150, %v1151
      %v1153 = vsel %vm593, %v1032, 0.0
      %v1154 = vadd.f32 %v1152, %v1153
      %v1155 = vsel %vm593, %v1033, 0.0
      %v1156 = vadd.f32 %v1154, %v1155
      %v1157 = vsel %vm593, %v1034, 0.0
      %v1158 = vadd.f32 %v1156, %v1157
      %v1159 = vsel %vm593, %v1035, 0.0
      %v1160 = vadd.f32 %v1158, %v1159
      %v1161 = vsel %vm593, %v1036, 0.0
      %v1162 = vadd.f32 %v1160, %v1161
      %v1163 = vsel %vm593, %v1037, 0.0
      %v1164 = vadd.f32 %v1162, %v1163
      %v1165 = vsel %vm593, %v1038, 0.0
      %v1166 = vadd.f32 %v1164, %v1165
      %v1167 = vsel %vm593, %v1039, 0.0
      %v1168 = vadd.f32 %v1166, %v1167
      %v1169 = vsel %vm593, %v1040, 0.0
      %v1170 = vadd.f32 %v1168, %v1169
      %v1171 = vsel %vm593, %v1041, 0.0
      %v1172 = vadd.f32 %v1170, %v1171
      %v1173 = vsel %vm593, %v1042, 0.0
      %v1174 = vadd.f32 %v1172, %v1173
      %v1175 = vrot.slane %v1174, 4
      %v1176 = vadd.f32 %v1174, %v1175
      %v1177 = vrot.slane %v1176, 2
      %v1178 = vadd.f32 %v1176, %v1177
      %v1179 = vrot.slane %v1178, 1
      %v1180 = vadd.f32 %v1178, %v1179
      %v1181 = vmul.f32 %v1111, 0.00390625
      %v1182 = vmul.f32 %v1180, 0.00390625
      %v1183 = vpack.c.bf16 %v1181, %v1181
      %v1184 = vpack.c.bf16 %v1182, %v1182
      %v1185 = vld [vmem:[%s2] sm:$0xff]
      %v1186 = vld [vmem:[%s2 + $0x8] sm:$0xff]
      %v1187 = vld [vmem:[%s2 + $0x10] sm:$0xff]
      %v1188 = vld [vmem:[%s2 + $0x18] sm:$0xff]
      %v1189 = vld [vmem:[%s2 + $0x20] sm:$0xff]
      %v1190 = vld [vmem:[%s2 + $0x28] sm:$0xff]
      %v1191 = vld [vmem:[%s2 + $0x30] sm:$0xff]
      %v1192 = vld [vmem:[%s2 + $0x38] sm:$0xff]
      %v1193 = vld [vmem:[%s2 + $0x40] sm:$0xff]
      %v1194 = vld [vmem:[%s2 + $0x48] sm:$0xff]
      %v1195 = vld [vmem:[%s2 + $0x50] sm:$0xff]
      %v1196 = vld [vmem:[%s2 + $0x58] sm:$0xff]
      %v1197 = vld [vmem:[%s2 + $0x60] sm:$0xff]
      %v1198 = vld [vmem:[%s2 + $0x68] sm:$0xff]
      %v1199 = vld [vmem:[%s2 + $0x70] sm:$0xff]
      %v1200 = vld [vmem:[%s2 + $0x78] sm:$0xff]
      %v1201 = vld [vmem:[%s3] sm:$0xf]
      %v1203 = vlaneseq
      %v1204 = vshrl.u32 %v1203, 7
      %v1205 = vsub.s32 0, %v1204
      %v1206 = vrot.slane %v1201, %v1205
      %v1207 = vlaneseq
      %v1208 = vshrl.u32 %v1207, 7
      %v1209 = vsub.s32 1, %v1208
      %v1210 = vrot.slane %v1201, %v1209
      %v1211 = vlaneseq
      %v1212 = vshrl.u32 %v1211, 7
      %v1213 = vsub.s32 2, %v1212
      %v1214 = vrot.slane %v1201, %v1213
      %v1215 = vlaneseq
      %v1216 = vshrl.u32 %v1215, 7
      %v1217 = vsub.s32 3, %v1216
      %v1218 = vrot.slane %v1201, %v1217
      %v1225 = vunpack.c.l.b16 %v1183
      %v1226 = vunpack.c.l.b16 %v1184
      %vm1227 = vcmask 1041409
      %v1228 = vsel %vm1227, %v1226, %v1225
      %v1229 = vpack.c.b16 %v1228, %v1228
      %v1246 = vunpack.c.l.b16 %v1185
      %v1247 = vunpack.c.h.b16 %v1185
      %v1248 = vunpack.c.l.b16 %v1186
      %v1249 = vunpack.c.h.b16 %v1186
      %v1250 = vunpack.c.l.b16 %v1187
      %v1251 = vunpack.c.h.b16 %v1187
      %v1252 = vunpack.c.l.b16 %v1188
      %v1253 = vunpack.c.h.b16 %v1188
      %v1254 = vunpack.c.l.b16 %v1189
      %v1255 = vunpack.c.h.b16 %v1189
      %v1256 = vunpack.c.l.b16 %v1190
      %v1257 = vunpack.c.h.b16 %v1190
      %v1258 = vunpack.c.l.b16 %v1191
      %v1259 = vunpack.c.h.b16 %v1191
      %v1260 = vunpack.c.l.b16 %v1192
      %v1261 = vunpack.c.h.b16 %v1192
      %v1262 = vunpack.c.l.b16 %v1193
      %v1263 = vunpack.c.h.b16 %v1193
      %v1264 = vunpack.c.l.b16 %v1194
      %v1265 = vunpack.c.h.b16 %v1194
      %v1266 = vunpack.c.l.b16 %v1195
      %v1267 = vunpack.c.h.b16 %v1195
      %v1268 = vunpack.c.l.b16 %v1196
      %v1269 = vunpack.c.h.b16 %v1196
      %v1270 = vunpack.c.l.b16 %v1197
      %v1271 = vunpack.c.h.b16 %v1197
      %v1272 = vunpack.c.l.b16 %v1198
      %v1273 = vunpack.c.h.b16 %v1198
      %v1274 = vunpack.c.l.b16 %v1199
      %v1275 = vunpack.c.h.b16 %v1199
      %v1276 = vunpack.c.l.b16 %v1200
      %v1277 = vunpack.c.h.b16 %v1200
      %v1278 = vpack.c.b16 %v1250, %v1246
      %v1279 = vpack.c.b16 %v1251, %v1247
      %v1280 = vpack.c.b16 %v1252, %v1248
      %v1281 = vpack.c.b16 %v1253, %v1249
      %v1282 = vpack.c.b16 %v1258, %v1254
      %v1283 = vpack.c.b16 %v1259, %v1255
      %v1284 = vpack.c.b16 %v1260, %v1256
      %v1285 = vpack.c.b16 %v1261, %v1257
      %v1286 = vpack.c.b16 %v1266, %v1262
      %v1287 = vpack.c.b16 %v1267, %v1263
      %v1288 = vpack.c.b16 %v1268, %v1264
      %v1289 = vpack.c.b16 %v1269, %v1265
      %v1290 = vpack.c.b16 %v1274, %v1270
      %v1291 = vpack.c.b16 %v1275, %v1271
      %v1292 = vpack.c.b16 %v1276, %v1272
      %v1293 = vpack.c.b16 %v1277, %v1273
      %v1311 = vsel %vm593, %v1229, 0
      %1313 = vmatprep.subr.bf16.mxu0 %v1279
      %1314 = vmatpush1.bf16.msra.mxu0 %v1278
      %1315 = vmatprep.subr.bf16.mxu0 %v1283
      %1316 = vmatpush1.bf16.msra.mxu0 %v1282
      %1317 = vmatprep.subr.bf16.mxu0 %v1287
      %1318 = vmatpush1.bf16.msra.mxu0 %v1286
      %1319 = vmatprep.subr.bf16.mxu0 %v1291
      %1320 = vmatpush1.bf16.msra.mxu0 %v1290
      %1321 = vmatprep.subr.bf16.mxu0 0
      %1322 = vmatpush1.bf16.msra.mxu0 0
      %1323 = vmatprep.subr.bf16.mxu0 0
      %1324 = vmatpush1.bf16.msra.mxu0 0
      %1325 = vmatprep.subr.bf16.mxu0 0
      %1326 = vmatpush1.bf16.msra.mxu0 0
      %1327 = vmatprep.subr.bf16.mxu0 0
      %1328 = vmatpush1.bf16.msra.mxu0 0
      %1329 = vmatprep.subr.bf16.mxu0 0
      %1330 = vmatpush1.bf16.msra.mxu0 0
      %1331 = vmatprep.subr.bf16.mxu0 0
      %1332 = vmatpush1.bf16.msra.mxu0 0
      %1333 = vmatprep.subr.bf16.mxu0 0
      %1334 = vmatpush1.bf16.msra.mxu0 0
      %1335 = vmatprep.subr.bf16.mxu0 0
      %1336 = vmatpush1.bf16.msra.mxu0 0
      %1337 = vmatprep.subr.bf16.mxu0 0
      %1338 = vmatpush1.bf16.msra.mxu0 0
      %1339 = vmatprep.subr.bf16.mxu0 0
      %1340 = vmatpush1.bf16.msra.mxu0 0
      %1341 = vmatprep.subr.bf16.mxu0 0
      %1342 = vmatpush1.bf16.msra.mxu0 0
      %1343 = vmatprep.subr.bf16.mxu0 0
      %1344 = vmatpush1.bf16.msra.mxu0 0
      %1345 = vmatprep.mubr.bf16.mxu0 0
      %1346 = vmatmul.mubr.bf16.gmra.mrb[0].mxu0 %v1311
      %v1347 = vpop.f32.mrb[0].mxu0
      %v1348 = vadd.f32 %v1206, %v1347
      %v1349 = vpop.f32.mrb[0].mxu0
      %v1350 = vadd.f32 %v1210, %v1349
      %v1351 = vpop.f32.mrb[0].mxu0
      %v1352 = vpop.f32.mrb[0].mxu0
      %1353 = vdwg.mxu0
      %1354 = vmatprep.subr.bf16.mxu0 %v1281
      %1355 = vmatpush1.bf16.msra.mxu0 %v1280
      %1356 = vmatprep.subr.bf16.mxu0 %v1285
      %1357 = vmatpush1.bf16.msra.mxu0 %v1284
      %1358 = vmatprep.subr.bf16.mxu0 %v1289
      %1359 = vmatpush1.bf16.msra.mxu0 %v1288
      %1360 = vmatprep.subr.bf16.mxu0 %v1293
      %1361 = vmatpush1.bf16.msra.mxu0 %v1292
      %1362 = vmatprep.subr.bf16.mxu0 0
      %1363 = vmatpush1.bf16.msra.mxu0 0
      %1364 = vmatprep.subr.bf16.mxu0 0
      %1365 = vmatpush1.bf16.msra.mxu0 0
      %1366 = vmatprep.subr.bf16.mxu0 0
      %1367 = vmatpush1.bf16.msra.mxu0 0
      %1368 = vmatprep.subr.bf16.mxu0 0
      %1369 = vmatpush1.bf16.msra.mxu0 0
      %1370 = vmatprep.subr.bf16.mxu0 0
      %1371 = vmatpush1.bf16.msra.mxu0 0
      %1372 = vmatprep.subr.bf16.mxu0 0
      %1373 = vmatpush1.bf16.msra.mxu0 0
      %1374 = vmatprep.subr.bf16.mxu0 0
      %1375 = vmatpush1.bf16.msra.mxu0 0
      %1376 = vmatprep.subr.bf16.mxu0 0
      %1377 = vmatpush1.bf16.msra.mxu0 0
      %1378 = vmatprep.subr.bf16.mxu0 0
      %1379 = vmatpush1.bf16.msra.mxu0 0
      %1380 = vmatprep.subr.bf16.mxu0 0
      %1381 = vmatpush1.bf16.msra.mxu0 0
      %1382 = vmatprep.subr.bf16.mxu0 0
      %1383 = vmatpush1.bf16.msra.mxu0 0
      %1384 = vmatprep.subr.bf16.mxu0 0
      %1385 = vmatpush1.bf16.msra.mxu0 0
      %1386 = vmatprep.mubr.bf16.mxu0 0
      %1387 = vmatmul.mubr.bf16.gmra.mrb[0].mxu0 %v1311
      %v1388 = vpop.f32.mrb[0].mxu0
      %v1389 = vadd.f32 %v1214, %v1388
      %v1390 = vpop.f32.mrb[0].mxu0
      %v1391 = vadd.f32 %v1218, %v1390
      %v1392 = vpop.f32.mrb[0].mxu0
      %v1393 = vpop.f32.mrb[0].mxu0
      %1394 = vdwg.mxu0
      %v1395 = vmax.f32 %v1348, 0.0
      %v1396 = vmax.f32 %v1350, 0.0
      %v1397 = vmax.f32 %v1389, 0.0
      %v1398 = vmax.f32 %v1391, 0.0
      %v1399 = vpack.c.bf16 %v1395, %v1395
      %v1400 = vpack.c.bf16 %v1396, %v1396
      %v1401 = vpack.c.bf16 %v1397, %v1397
      %v1402 = vpack.c.bf16 %v1398, %v1398
      %v1403 = vld [vmem:[%s4] sm:$0xff]
      %v1404 = vld [vmem:[%s4 + $0x8] sm:$0xff]
      %v1405 = vld [vmem:[%s4 + $0x10] sm:$0xff]
      %v1406 = vld [vmem:[%s4 + $0x18] sm:$0xff]
      %v1407 = vld [vmem:[%s4 + $0x20] sm:$0xff]
      %v1408 = vld [vmem:[%s4 + $0x28] sm:$0xff]
      %v1409 = vld [vmem:[%s4 + $0x30] sm:$0xff]
      %v1410 = vld [vmem:[%s4 + $0x38] sm:$0xff]
      %v1411 = vld [vmem:[%s4 + $0x40] sm:$0xff]
      %v1412 = vld [vmem:[%s4 + $0x48] sm:$0xff]
      %v1413 = vld [vmem:[%s4 + $0x50] sm:$0xff]
      %v1414 = vld [vmem:[%s4 + $0x58] sm:$0xff]
      %v1415 = vld [vmem:[%s4 + $0x60] sm:$0xff]
      %v1416 = vld [vmem:[%s4 + $0x68] sm:$0xff]
      %v1417 = vld [vmem:[%s4 + $0x70] sm:$0xff]
      %v1418 = vld [vmem:[%s4 + $0x78] sm:$0xff]
      %v1419 = vld [vmem:[%s4 + $0x80] sm:$0xff]
      %v1420 = vld [vmem:[%s4 + $0x88] sm:$0xff]
      %v1421 = vld [vmem:[%s4 + $0x90] sm:$0xff]
      %v1422 = vld [vmem:[%s4 + $0x98] sm:$0xff]
      %v1423 = vld [vmem:[%s4 + $0xa0] sm:$0xff]
      %v1424 = vld [vmem:[%s4 + $0xa8] sm:$0xff]
      %v1425 = vld [vmem:[%s4 + $0xb0] sm:$0xff]
      %v1426 = vld [vmem:[%s4 + $0xb8] sm:$0xff]
      %v1427 = vld [vmem:[%s4 + $0xc0] sm:$0xff]
      %v1428 = vld [vmem:[%s4 + $0xc8] sm:$0xff]
      %v1429 = vld [vmem:[%s4 + $0xd0] sm:$0xff]
      %v1430 = vld [vmem:[%s4 + $0xd8] sm:$0xff]
      %v1431 = vld [vmem:[%s4 + $0xe0] sm:$0xff]
      %v1432 = vld [vmem:[%s4 + $0xe8] sm:$0xff]
      %v1433 = vld [vmem:[%s4 + $0xf0] sm:$0xff]
      %v1434 = vld [vmem:[%s4 + $0xf8] sm:$0xff]
      %v1435 = vld [vmem:[%s4 + $0x100] sm:$0xff]
      %v1436 = vld [vmem:[%s4 + $0x108] sm:$0xff]
      %v1437 = vld [vmem:[%s4 + $0x110] sm:$0xff]
      %v1438 = vld [vmem:[%s4 + $0x118] sm:$0xff]
      %v1439 = vld [vmem:[%s4 + $0x120] sm:$0xff]
      %v1440 = vld [vmem:[%s4 + $0x128] sm:$0xff]
      %v1441 = vld [vmem:[%s4 + $0x130] sm:$0xff]
      %v1442 = vld [vmem:[%s4 + $0x138] sm:$0xff]
      %v1443 = vld [vmem:[%s4 + $0x140] sm:$0xff]
      %v1444 = vld [vmem:[%s4 + $0x148] sm:$0xff]
      %v1445 = vld [vmem:[%s4 + $0x150] sm:$0xff]
      %v1446 = vld [vmem:[%s4 + $0x158] sm:$0xff]
      %v1447 = vld [vmem:[%s4 + $0x160] sm:$0xff]
      %v1448 = vld [vmem:[%s4 + $0x168] sm:$0xff]
      %v1449 = vld [vmem:[%s4 + $0x170] sm:$0xff]
      %v1450 = vld [vmem:[%s4 + $0x178] sm:$0xff]
      %v1451 = vld [vmem:[%s4 + $0x180] sm:$0xff]
      %v1452 = vld [vmem:[%s4 + $0x188] sm:$0xff]
      %v1453 = vld [vmem:[%s4 + $0x190] sm:$0xff]
      %v1454 = vld [vmem:[%s4 + $0x198] sm:$0xff]
      %v1455 = vld [vmem:[%s4 + $0x1a0] sm:$0xff]
      %v1456 = vld [vmem:[%s4 + $0x1a8] sm:$0xff]
      %v1457 = vld [vmem:[%s4 + $0x1b0] sm:$0xff]
      %v1458 = vld [vmem:[%s4 + $0x1b8] sm:$0xff]
      %v1459 = vld [vmem:[%s4 + $0x1c0] sm:$0xff]
      %v1460 = vld [vmem:[%s4 + $0x1c8] sm:$0xff]
      %v1461 = vld [vmem:[%s4 + $0x1d0] sm:$0xff]
      %v1462 = vld [vmem:[%s4 + $0x1d8] sm:$0xff]
      %v1463 = vld [vmem:[%s4 + $0x1e0] sm:$0xff]
      %v1464 = vld [vmem:[%s4 + $0x1e8] sm:$0xff]
      %v1465 = vld [vmem:[%s4 + $0x1f0] sm:$0xff]
      %v1466 = vld [vmem:[%s4 + $0x1f8] sm:$0xff]
      %v1467 = vld [vmem:[%s5] sm:$0xff]
      %v1468 = vld [vmem:[%s5 + $0x8] sm:$0xff]
      %v1469 = vld [vmem:[%s5 + $0x10] sm:$0xff]
      %v1470 = vld [vmem:[%s5 + $0x18] sm:$0xff]
      %v1471 = vld [vmem:[%s5 + $0x20] sm:$0xff]
      %v1472 = vld [vmem:[%s5 + $0x28] sm:$0xff]
      %v1473 = vld [vmem:[%s5 + $0x30] sm:$0xff]
      %v1474 = vld [vmem:[%s5 + $0x38] sm:$0xff]
      %v1475 = vld [vmem:[%s5 + $0x40] sm:$0xff]
      %v1476 = vld [vmem:[%s5 + $0x48] sm:$0xff]
      %v1477 = vld [vmem:[%s5 + $0x50] sm:$0xff]
      %v1478 = vld [vmem:[%s5 + $0x58] sm:$0xff]
      %v1479 = vld [vmem:[%s5 + $0x60] sm:$0xff]
      %v1480 = vld [vmem:[%s5 + $0x68] sm:$0xff]
      %v1481 = vld [vmem:[%s5 + $0x70] sm:$0xff]
      %v1482 = vld [vmem:[%s5 + $0x78] sm:$0xff]
      %v1483 = vld [vmem:[%s5 + $0x80] sm:$0xff]
      %v1484 = vld [vmem:[%s5 + $0x88] sm:$0xff]
      %v1485 = vld [vmem:[%s5 + $0x90] sm:$0xff]
      %v1486 = vld [vmem:[%s5 + $0x98] sm:$0xff]
      %v1487 = vld [vmem:[%s5 + $0xa0] sm:$0xff]
      %v1488 = vld [vmem:[%s5 + $0xa8] sm:$0xff]
      %v1489 = vld [vmem:[%s5 + $0xb0] sm:$0xff]
      %v1490 = vld [vmem:[%s5 + $0xb8] sm:$0xff]
      %v1491 = vld [vmem:[%s5 + $0xc0] sm:$0xff]
      %v1492 = vld [vmem:[%s5 + $0xc8] sm:$0xff]
      %v1493 = vld [vmem:[%s5 + $0xd0] sm:$0xff]
      %v1494 = vld [vmem:[%s5 + $0xd8] sm:$0xff]
      %v1495 = vld [vmem:[%s5 + $0xe0] sm:$0xff]
      %v1496 = vld [vmem:[%s5 + $0xe8] sm:$0xff]
      %v1497 = vld [vmem:[%s5 + $0xf0] sm:$0xff]
      %v1498 = vld [vmem:[%s5 + $0xf8] sm:$0xff]
      %v1499 = vld [vmem:[%s5 + $0x100] sm:$0xff]
      %v1500 = vld [vmem:[%s5 + $0x108] sm:$0xff]
      %v1501 = vld [vmem:[%s5 + $0x110] sm:$0xff]
      %v1502 = vld [vmem:[%s5 + $0x118] sm:$0xff]
      %v1503 = vld [vmem:[%s5 + $0x120] sm:$0xff]
      %v1504 = vld [vmem:[%s5 + $0x128] sm:$0xff]
      %v1505 = vld [vmem:[%s5 + $0x130] sm:$0xff]
      %v1506 = vld [vmem:[%s5 + $0x138] sm:$0xff]
      %v1507 = vld [vmem:[%s5 + $0x140] sm:$0xff]
      %v1508 = vld [vmem:[%s5 + $0x148] sm:$0xff]
      %v1509 = vld [vmem:[%s5 + $0x150] sm:$0xff]
      %v1510 = vld [vmem:[%s5 + $0x158] sm:$0xff]
      %v1511 = vld [vmem:[%s5 + $0x160] sm:$0xff]
      %v1512 = vld [vmem:[%s5 + $0x168] sm:$0xff]
      %v1513 = vld [vmem:[%s5 + $0x170] sm:$0xff]
      %v1514 = vld [vmem:[%s5 + $0x178] sm:$0xff]
      %v1515 = vld [vmem:[%s5 + $0x180] sm:$0xff]
      %v1516 = vld [vmem:[%s5 + $0x188] sm:$0xff]
      %v1517 = vld [vmem:[%s5 + $0x190] sm:$0xff]
      %v1518 = vld [vmem:[%s5 + $0x198] sm:$0xff]
      %v1519 = vld [vmem:[%s5 + $0x1a0] sm:$0xff]
      %v1520 = vld [vmem:[%s5 + $0x1a8] sm:$0xff]
      %v1521 = vld [vmem:[%s5 + $0x1b0] sm:$0xff]
      %v1522 = vld [vmem:[%s5 + $0x1b8] sm:$0xff]
      %v1523 = vld [vmem:[%s5 + $0x1c0] sm:$0xff]
      %v1524 = vld [vmem:[%s5 + $0x1c8] sm:$0xff]
      %v1525 = vld [vmem:[%s5 + $0x1d0] sm:$0xff]
      %v1526 = vld [vmem:[%s5 + $0x1d8] sm:$0xff]
      %v1527 = vld [vmem:[%s5 + $0x1e0] sm:$0xff]
      %v1528 = vld [vmem:[%s5 + $0x1e8] sm:$0xff]
      %v1529 = vld [vmem:[%s5 + $0x1f0] sm:$0xff]
      %v1530 = vld [vmem:[%s5 + $0x1f8] sm:$0xff]
      %v1532 = vshrl.u32 %v1399, 16
      %v1535 = vshrl.u32 %v1400, 16
      %v1538 = vshrl.u32 %v1401, 16
      %v1541 = vshrl.u32 %v1402, 16
      %v1611 = vunpack.c.l.b16 %v1467
      %v1612 = vunpack.c.h.b16 %v1467
      %v1613 = vunpack.c.l.b16 %v1468
      %v1614 = vunpack.c.h.b16 %v1468
      %v1615 = vunpack.c.l.b16 %v1469
      %v1616 = vunpack.c.h.b16 %v1469
      %v1617 = vunpack.c.l.b16 %v1470
      %v1618 = vunpack.c.h.b16 %v1470
      %v1619 = vunpack.c.l.b16 %v1471
      %v1620 = vunpack.c.h.b16 %v1471
      %v1621 = vunpack.c.l.b16 %v1472
      %v1622 = vunpack.c.h.b16 %v1472
      %v1623 = vunpack.c.l.b16 %v1473
      %v1624 = vunpack.c.h.b16 %v1473
      %v1625 = vunpack.c.l.b16 %v1474
      %v1626 = vunpack.c.h.b16 %v1474
      %v1627 = vunpack.c.l.b16 %v1475
      %v1628 = vunpack.c.h.b16 %v1475
      %v1629 = vunpack.c.l.b16 %v1476
      %v1630 = vunpack.c.h.b16 %v1476
      %v1631 = vunpack.c.l.b16 %v1477
      %v1632 = vunpack.c.h.b16 %v1477
      %v1633 = vunpack.c.l.b16 %v1478
      %v1634 = vunpack.c.h.b16 %v1478
      %v1635 = vunpack.c.l.b16 %v1479
      %v1636 = vunpack.c.h.b16 %v1479
      %v1637 = vunpack.c.l.b16 %v1480
      %v1638 = vunpack.c.h.b16 %v1480
      %v1639 = vunpack.c.l.b16 %v1481
      %v1640 = vunpack.c.h.b16 %v1481
      %v1641 = vunpack.c.l.b16 %v1482
      %v1642 = vunpack.c.h.b16 %v1482
      %v1643 = vunpack.c.l.b16 %v1483
      %v1644 = vunpack.c.h.b16 %v1483
      %v1645 = vunpack.c.l.b16 %v1484
      %v1646 = vunpack.c.h.b16 %v1484
      %v1647 = vunpack.c.l.b16 %v1485
      %v1648 = vunpack.c.h.b16 %v1485
      %v1649 = vunpack.c.l.b16 %v1486
      %v1650 = vunpack.c.h.b16 %v1486
      %v1651 = vunpack.c.l.b16 %v1487
      %v1652 = vunpack.c.h.b16 %v1487
      %v1653 = vunpack.c.l.b16 %v1488
      %v1654 = vunpack.c.h.b16 %v1488
      %v1655 = vunpack.c.l.b16 %v1489
      %v1656 = vunpack.c.h.b16 %v1489
      %v1657 = vunpack.c.l.b16 %v1490
      %v1658 = vunpack.c.h.b16 %v1490
      %v1659 = vunpack.c.l.b16 %v1491
      %v1660 = vunpack.c.h.b16 %v1491
      %v1661 = vunpack.c.l.b16 %v1492
      %v1662 = vunpack.c.h.b16 %v1492
      %v1663 = vunpack.c.l.b16 %v1493
      %v1664 = vunpack.c.h.b16 %v1493
      %v1665 = vunpack.c.l.b16 %v1494
      %v1666 = vunpack.c.h.b16 %v1494
      %v1667 = vunpack.c.l.b16 %v1495
      %v1668 = vunpack.c.h.b16 %v1495
      %v1669 = vunpack.c.l.b16 %v1496
      %v1670 = vunpack.c.h.b16 %v1496
      %v1671 = vunpack.c.l.b16 %v1497
      %v1672 = vunpack.c.h.b16 %v1497
      %v1673 = vunpack.c.l.b16 %v1498
      %v1674 = vunpack.c.h.b16 %v1498
      %v1675 = vunpack.c.l.b16 %v1499
      %v1676 = vunpack.c.h.b16 %v1499
      %v1677 = vunpack.c.l.b16 %v1500
      %v1678 = vunpack.c.h.b16 %v1500
      %v1679 = vunpack.c.l.b16 %v1501
      %v1680 = vunpack.c.h.b16 %v1501
      %v1681 = vunpack.c.l.b16 %v1502
      %v1682 = vunpack.c.h.b16 %v1502
      %v1683 = vunpack.c.l.b16 %v1503
      %v1684 = vunpack.c.h.b16 %v1503
      %v1685 = vunpack.c.l.b16 %v1504
      %v1686 = vunpack.c.h.b16 %v1504
      %v1687 = vunpack.c.l.b16 %v1505
      %v1688 = vunpack.c.h.b16 %v1505
      %v1689 = vunpack.c.l.b16 %v1506
      %v1690 = vunpack.c.h.b16 %v1506
      %v1691 = vunpack.c.l.b16 %v1507
      %v1692 = vunpack.c.h.b16 %v1507
      %v1693 = vunpack.c.l.b16 %v1508
      %v1694 = vunpack.c.h.b16 %v1508
      %v1695 = vunpack.c.l.b16 %v1509
      %v1696 = vunpack.c.h.b16 %v1509
      %v1697 = vunpack.c.l.b16 %v1510
      %v1698 = vunpack.c.h.b16 %v1510
      %v1699 = vunpack.c.l.b16 %v1511
      %v1700 = vunpack.c.h.b16 %v1511
      %v1701 = vunpack.c.l.b16 %v1512
      %v1702 = vunpack.c.h.b16 %v1512
      %v1703 = vunpack.c.l.b16 %v1513
      %v1704 = vunpack.c.h.b16 %v1513
      %v1705 = vunpack.c.l.b16 %v1514
      %v1706 = vunpack.c.h.b16 %v1514
      %v1707 = vunpack.c.l.b16 %v1515
      %v1708 = vunpack.c.h.b16 %v1515
      %v1709 = vunpack.c.l.b16 %v1516
      %v1710 = vunpack.c.h.b16 %v1516
      %v1711 = vunpack.c.l.b16 %v1517
      %v1712 = vunpack.c.h.b16 %v1517
      %v1713 = vunpack.c.l.b16 %v1518
      %v1714 = vunpack.c.h.b16 %v1518
      %v1715 = vunpack.c.l.b16 %v1519
      %v1716 = vunpack.c.h.b16 %v1519
      %v1717 = vunpack.c.l.b16 %v1520
      %v1718 = vunpack.c.h.b16 %v1520
      %v1719 = vunpack.c.l.b16 %v1521
      %v1720 = vunpack.c.h.b16 %v1521
      %v1721 = vunpack.c.l.b16 %v1522
      %v1722 = vunpack.c.h.b16 %v1522
      %v1723 = vunpack.c.l.b16 %v1523
      %v1724 = vunpack.c.h.b16 %v1523
      %v1725 = vunpack.c.l.b16 %v1524
      %v1726 = vunpack.c.h.b16 %v1524
      %v1727 = vunpack.c.l.b16 %v1525
      %v1728 = vunpack.c.h.b16 %v1525
      %v1729 = vunpack.c.l.b16 %v1526
      %v1730 = vunpack.c.h.b16 %v1526
      %v1731 = vunpack.c.l.b16 %v1527
      %v1732 = vunpack.c.h.b16 %v1527
      %v1733 = vunpack.c.l.b16 %v1528
      %v1734 = vunpack.c.h.b16 %v1528
      %v1735 = vunpack.c.l.b16 %v1529
      %v1736 = vunpack.c.h.b16 %v1529
      %v1737 = vunpack.c.l.b16 %v1530
      %v1738 = vunpack.c.h.b16 %v1530
      %v1739 = vpack.c.b16 %v1613, %v1611
      %v1740 = vpack.c.b16 %v1614, %v1612
      %v1741 = vpack.c.b16 %v1617, %v1615
      %v1742 = vpack.c.b16 %v1618, %v1616
      %v1743 = vpack.c.b16 %v1621, %v1619
      %v1744 = vpack.c.b16 %v1622, %v1620
      %v1745 = vpack.c.b16 %v1625, %v1623
      %v1746 = vpack.c.b16 %v1626, %v1624
      %v1747 = vpack.c.b16 %v1629, %v1627
      %v1748 = vpack.c.b16 %v1630, %v1628
      %v1749 = vpack.c.b16 %v1633, %v1631
      %v1750 = vpack.c.b16 %v1634, %v1632
      %v1751 = vpack.c.b16 %v1637, %v1635
      %v1752 = vpack.c.b16 %v1638, %v1636
      %v1753 = vpack.c.b16 %v1641, %v1639
      %v1754 = vpack.c.b16 %v1642, %v1640
      %v1755 = vpack.c.b16 %v1645, %v1643
      %v1756 = vpack.c.b16 %v1646, %v1644
      %v1757 = vpack.c.b16 %v1649, %v1647
      %v1758 = vpack.c.b16 %v1650, %v1648
      %v1759 = vpack.c.b16 %v1653, %v1651
      %v1760 = vpack.c.b16 %v1654, %v1652
      %v1761 = vpack.c.b16 %v1657, %v1655
      %v1762 = vpack.c.b16 %v1658, %v1656
      %v1763 = vpack.c.b16 %v1661, %v1659
      %v1764 = vpack.c.b16 %v1662, %v1660
      %v1765 = vpack.c.b16 %v1665, %v1663
      %v1766 = vpack.c.b16 %v1666, %v1664
      %v1767 = vpack.c.b16 %v1669, %v1667
      %v1768 = vpack.c.b16 %v1670, %v1668
      %v1769 = vpack.c.b16 %v1673, %v1671
      %v1770 = vpack.c.b16 %v1674, %v1672
      %v1771 = vpack.c.b16 %v1677, %v1675
      %v1772 = vpack.c.b16 %v1678, %v1676
      %v1773 = vpack.c.b16 %v1681, %v1679
      %v1774 = vpack.c.b16 %v1682, %v1680
      %v1775 = vpack.c.b16 %v1685, %v1683
      %v1776 = vpack.c.b16 %v1686, %v1684
      %v1777 = vpack.c.b16 %v1689, %v1687
      %v1778 = vpack.c.b16 %v1690, %v1688
      %v1779 = vpack.c.b16 %v1693, %v1691
      %v1780 = vpack.c.b16 %v1694, %v1692
      %v1781 = vpack.c.b16 %v1697, %v1695
      %v1782 = vpack.c.b16 %v1698, %v1696
      %v1783 = vpack.c.b16 %v1701, %v1699
      %v1784 = vpack.c.b16 %v1702, %v1700
      %v1785 = vpack.c.b16 %v1705, %v1703
      %v1786 = vpack.c.b16 %v1706, %v1704
      %v1787 = vpack.c.b16 %v1709, %v1707
      %v1788 = vpack.c.b16 %v1710, %v1708
      %v1789 = vpack.c.b16 %v1713, %v1711
      %v1790 = vpack.c.b16 %v1714, %v1712
      %v1791 = vpack.c.b16 %v1717, %v1715
      %v1792 = vpack.c.b16 %v1718, %v1716
      %v1793 = vpack.c.b16 %v1721, %v1719
      %v1794 = vpack.c.b16 %v1722, %v1720
      %v1795 = vpack.c.b16 %v1725, %v1723
      %v1796 = vpack.c.b16 %v1726, %v1724
      %v1797 = vpack.c.b16 %v1729, %v1727
      %v1798 = vpack.c.b16 %v1730, %v1728
      %v1799 = vpack.c.b16 %v1733, %v1731
      %v1800 = vpack.c.b16 %v1734, %v1732
      %v1801 = vpack.c.b16 %v1737, %v1735
      %v1802 = vpack.c.b16 %v1738, %v1736
      %1867 = vmatprep.subr.bf16.mxu0 %v1740
      %1868 = vmatpush1.bf16.msra.mxu0 %v1739
      %1869 = vmatprep.subr.bf16.mxu0 %v1742
      %1870 = vmatpush1.bf16.msra.mxu0 %v1741
      %1871 = vmatprep.subr.bf16.mxu0 %v1744
      %1872 = vmatpush1.bf16.msra.mxu0 %v1743
      %1873 = vmatprep.subr.bf16.mxu0 %v1746
      %1874 = vmatpush1.bf16.msra.mxu0 %v1745
      %1875 = vmatprep.subr.bf16.mxu0 %v1748
      %1876 = vmatpush1.bf16.msra.mxu0 %v1747
      %1877 = vmatprep.subr.bf16.mxu0 %v1750
      %1878 = vmatpush1.bf16.msra.mxu0 %v1749
      %1879 = vmatprep.subr.bf16.mxu0 %v1752
      %1880 = vmatpush1.bf16.msra.mxu0 %v1751
      %1881 = vmatprep.subr.bf16.mxu0 %v1754
      %1882 = vmatpush1.bf16.msra.mxu0 %v1753
      %1883 = vmatprep.subr.bf16.mxu0 %v1756
      %1884 = vmatpush1.bf16.msra.mxu0 %v1755
      %1885 = vmatprep.subr.bf16.mxu0 %v1758
      %1886 = vmatpush1.bf16.msra.mxu0 %v1757
      %1887 = vmatprep.subr.bf16.mxu0 %v1760
      %1888 = vmatpush1.bf16.msra.mxu0 %v1759
      %1889 = vmatprep.subr.bf16.mxu0 %v1762
      %1890 = vmatpush1.bf16.msra.mxu0 %v1761
      %1891 = vmatprep.subr.bf16.mxu0 %v1764
      %1892 = vmatpush1.bf16.msra.mxu0 %v1763
      %1893 = vmatprep.subr.bf16.mxu0 %v1766
      %1894 = vmatpush1.bf16.msra.mxu0 %v1765
      %1895 = vmatprep.subr.bf16.mxu0 %v1768
      %1896 = vmatpush1.bf16.msra.mxu0 %v1767
      %1897 = vmatprep.subr.bf16.mxu0 %v1770
      %1898 = vmatpush1.bf16.msra.mxu0 %v1769
      %1899 = vmatprep.mubr.bf16.mxu0 %v1535
      %1900 = vmatmul.mubr.bf16.gmra.mrb[0].mxu0 %v1532
      %v1901 = vpop.f32.mrb[0].mxu0
      %v1902 = vadd.f32 0.0, %v1901
      %v1903 = vpop.f32.mrb[0].mxu0
      %v1904 = vadd.f32 0.0, %v1903
      %v1905 = vpop.f32.mrb[0].mxu0
      %v1906 = vpop.f32.mrb[0].mxu0
      %1907 = vdwg.mxu0
      %1908 = vmatprep.subr.bf16.mxu0 %v1772
      %1909 = vmatpush1.bf16.msra.mxu0 %v1771
      %1910 = vmatprep.subr.bf16.mxu0 %v1774
      %1911 = vmatpush1.bf16.msra.mxu0 %v1773
      %1912 = vmatprep.subr.bf16.mxu0 %v1776
      %1913 = vmatpush1.bf16.msra.mxu0 %v1775
      %1914 = vmatprep.subr.bf16.mxu0 %v1778
      %1915 = vmatpush1.bf16.msra.mxu0 %v1777
      %1916 = vmatprep.subr.bf16.mxu0 %v1780
      %1917 = vmatpush1.bf16.msra.mxu0 %v1779
      %1918 = vmatprep.subr.bf16.mxu0 %v1782
      %1919 = vmatpush1.bf16.msra.mxu0 %v1781
      %1920 = vmatprep.subr.bf16.mxu0 %v1784
      %1921 = vmatpush1.bf16.msra.mxu0 %v1783
      %1922 = vmatprep.subr.bf16.mxu0 %v1786
      %1923 = vmatpush1.bf16.msra.mxu0 %v1785
      %1924 = vmatprep.subr.bf16.mxu0 %v1788
      %1925 = vmatpush1.bf16.msra.mxu0 %v1787
      %1926 = vmatprep.subr.bf16.mxu0 %v1790
      %1927 = vmatpush1.bf16.msra.mxu0 %v1789
      %1928 = vmatprep.subr.bf16.mxu0 %v1792
      %1929 = vmatpush1.bf16.msra.mxu0 %v1791
      %1930 = vmatprep.subr.bf16.mxu0 %v1794
      %1931 = vmatpush1.bf16.msra.mxu0 %v1793
      %1932 = vmatprep.subr.bf16.mxu0 %v1796
      %1933 = vmatpush1.bf16.msra.mxu0 %v1795
      %1934 = vmatprep.subr.bf16.mxu0 %v1798
      %1935 = vmatpush1.bf16.msra.mxu0 %v1797
      %1936 = vmatprep.subr.bf16.mxu0 %v1800
      %1937 = vmatpush1.bf16.msra.mxu0 %v1799
      %1938 = vmatprep.subr.bf16.mxu0 %v1802
      %1939 = vmatpush1.bf16.msra.mxu0 %v1801
      %1940 = vmatprep.mubr.bf16.mxu0 %v1541
      %1941 = vmatmul.mubr.bf16.gmra.mrb[0].mxu0 %v1538
      %v1942 = vpop.f32.mrb[0].mxu0
      %v1943 = vadd.f32 %v1902, %v1942
      %v1944 = vpop.f32.mrb[0].mxu0
      %v1945 = vadd.f32 %v1904, %v1944
      %v1946 = vpop.f32.mrb[0].mxu0
      %v1947 = vpop.f32.mrb[0].mxu0
      %1948 = vdwg.mxu0
      %v2013 = vunpack.c.l.b16 %v1403
      %v2014 = vunpack.c.h.b16 %v1403
      %v2015 = vunpack.c.l.b16 %v1404
      %v2016 = vunpack.c.h.b16 %v1404
      %v2017 = vunpack.c.l.b16 %v1405
      %v2018 = vunpack.c.h.b16 %v1405
      %v2019 = vunpack.c.l.b16 %v1406
      %v2020 = vunpack.c.h.b16 %v1406
      %v2021 = vunpack.c.l.b16 %v1407
      %v2022 = vunpack.c.h.b16 %v1407
      %v2023 = vunpack.c.l.b16 %v1408
      %v2024 = vunpack.c.h.b16 %v1408
      %v2025 = vunpack.c.l.b16 %v1409
      %v2026 = vunpack.c.h.b16 %v1409
      %v2027 = vunpack.c.l.b16 %v1410
      %v2028 = vunpack.c.h.b16 %v1410
      %v2029 = vunpack.c.l.b16 %v1411
      %v2030 = vunpack.c.h.b16 %v1411
      %v2031 = vunpack.c.l.b16 %v1412
      %v2032 = vunpack.c.h.b16 %v1412
      %v2033 = vunpack.c.l.b16 %v1413
      %v2034 = vunpack.c.h.b16 %v1413
      %v2035 = vunpack.c.l.b16 %v1414
      %v2036 = vunpack.c.h.b16 %v1414
      %v2037 = vunpack.c.l.b16 %v1415
      %v2038 = vunpack.c.h.b16 %v1415
      %v2039 = vunpack.c.l.b16 %v1416
      %v2040 = vunpack.c.h.b16 %v1416
      %v2041 = vunpack.c.l.b16 %v1417
      %v2042 = vunpack.c.h.b16 %v1417
      %v2043 = vunpack.c.l.b16 %v1418
      %v2044 = vunpack.c.h.b16 %v1418
      %v2045 = vunpack.c.l.b16 %v1419
      %v2046 = vunpack.c.h.b16 %v1419
      %v2047 = vunpack.c.l.b16 %v1420
      %v2048 = vunpack.c.h.b16 %v1420
      %v2049 = vunpack.c.l.b16 %v1421
      %v2050 = vunpack.c.h.b16 %v1421
      %v2051 = vunpack.c.l.b16 %v1422
      %v2052 = vunpack.c.h.b16 %v1422
      %v2053 = vunpack.c.l.b16 %v1423
      %v2054 = vunpack.c.h.b16 %v1423
      %v2055 = vunpack.c.l.b16 %v1424
      %v2056 = vunpack.c.h.b16 %v1424
      %v2057 = vunpack.c.l.b16 %v1425
      %v2058 = vunpack.c.h.b16 %v1425
      %v2059 = vunpack.c.l.b16 %v1426
      %v2060 = vunpack.c.h.b16 %v1426
      %v2061 = vunpack.c.l.b16 %v1427
      %v2062 = vunpack.c.h.b16 %v1427
      %v2063 = vunpack.c.l.b16 %v1428
      %v2064 = vunpack.c.h.b16 %v1428
      %v2065 = vunpack.c.l.b16 %v1429
      %v2066 = vunpack.c.h.b16 %v1429
      %v2067 = vunpack.c.l.b16 %v1430
      %v2068 = vunpack.c.h.b16 %v1430
      %v2069 = vunpack.c.l.b16 %v1431
      %v2070 = vunpack.c.h.b16 %v1431
      %v2071 = vunpack.c.l.b16 %v1432
      %v2072 = vunpack.c.h.b16 %v1432
      %v2073 = vunpack.c.l.b16 %v1433
      %v2074 = vunpack.c.h.b16 %v1433
      %v2075 = vunpack.c.l.b16 %v1434
      %v2076 = vunpack.c.h.b16 %v1434
      %v2077 = vunpack.c.l.b16 %v1435
      %v2078 = vunpack.c.h.b16 %v1435
      %v2079 = vunpack.c.l.b16 %v1436
      %v2080 = vunpack.c.h.b16 %v1436
      %v2081 = vunpack.c.l.b16 %v1437
      %v2082 = vunpack.c.h.b16 %v1437
      %v2083 = vunpack.c.l.b16 %v1438
      %v2084 = vunpack.c.h.b16 %v1438
      %v2085 = vunpack.c.l.b16 %v1439
      %v2086 = vunpack.c.h.b16 %v1439
      %v2087 = vunpack.c.l.b16 %v1440
      %v2088 = vunpack.c.h.b16 %v1440
      %v2089 = vunpack.c.l.b16 %v1441
      %v2090 = vunpack.c.h.b16 %v1441
      %v2091 = vunpack.c.l.b16 %v1442
      %v2092 = vunpack.c.h.b16 %v1442
      %v2093 = vunpack.c.l.b16 %v1443
      %v2094 = vunpack.c.h.b16 %v1443
      %v2095 = vunpack.c.l.b16 %v1444
      %v2096 = vunpack.c.h.b16 %v1444
      %v2097 = vunpack.c.l.b16 %v1445
      %v2098 = vunpack.c.h.b16 %v1445
      %v2099 = vunpack.c.l.b16 %v1446
      %v2100 = vunpack.c.h.b16 %v1446
      %v2101 = vunpack.c.l.b16 %v1447
      %v2102 = vunpack.c.h.b16 %v1447
      %v2103 = vunpack.c.l.b16 %v1448
      %v2104 = vunpack.c.h.b16 %v1448
      %v2105 = vunpack.c.l.b16 %v1449
      %v2106 = vunpack.c.h.b16 %v1449
      %v2107 = vunpack.c.l.b16 %v1450
      %v2108 = vunpack.c.h.b16 %v1450
      %v2109 = vunpack.c.l.b16 %v1451
      %v2110 = vunpack.c.h.b16 %v1451
      %v2111 = vunpack.c.l.b16 %v1452
      %v2112 = vunpack.c.h.b16 %v1452
      %v2113 = vunpack.c.l.b16 %v1453
      %v2114 = vunpack.c.h.b16 %v1453
      %v2115 = vunpack.c.l.b16 %v1454
      %v2116 = vunpack.c.h.b16 %v1454
      %v2117 = vunpack.c.l.b16 %v1455
      %v2118 = vunpack.c.h.b16 %v1455
      %v2119 = vunpack.c.l.b16 %v1456
      %v2120 = vunpack.c.h.b16 %v1456
      %v2121 = vunpack.c.l.b16 %v1457
      %v2122 = vunpack.c.h.b16 %v1457
      %v2123 = vunpack.c.l.b16 %v1458
      %v2124 = vunpack.c.h.b16 %v1458
      %v2125 = vunpack.c.l.b16 %v1459
      %v2126 = vunpack.c.h.b16 %v1459
      %v2127 = vunpack.c.l.b16 %v1460
      %v2128 = vunpack.c.h.b16 %v1460
      %v2129 = vunpack.c.l.b16 %v1461
      %v2130 = vunpack.c.h.b16 %v1461
      %v2131 = vunpack.c.l.b16 %v1462
      %v2132 = vunpack.c.h.b16 %v1462
      %v2133 = vunpack.c.l.b16 %v1463
      %v2134 = vunpack.c.h.b16 %v1463
      %v2135 = vunpack.c.l.b16 %v1464
      %v2136 = vunpack.c.h.b16 %v1464
      %v2137 = vunpack.c.l.b16 %v1465
      %v2138 = vunpack.c.h.b16 %v1465
      %v2139 = vunpack.c.l.b16 %v1466
      %v2140 = vunpack.c.h.b16 %v1466
      %v2141 = vpack.c.b16 %v2015, %v2013
      %v2142 = vpack.c.b16 %v2016, %v2014
      %v2143 = vpack.c.b16 %v2019, %v2017
      %v2144 = vpack.c.b16 %v2020, %v2018
      %v2145 = vpack.c.b16 %v2023, %v2021
      %v2146 = vpack.c.b16 %v2024, %v2022
      %v2147 = vpack.c.b16 %v2027, %v2025
      %v2148 = vpack.c.b16 %v2028, %v2026
      %v2149 = vpack.c.b16 %v2031, %v2029
      %v2150 = vpack.c.b16 %v2032, %v2030
      %v2151 = vpack.c.b16 %v2035, %v2033
      %v2152 = vpack.c.b16 %v2036, %v2034
      %v2153 = vpack.c.b16 %v2039, %v2037
      %v2154 = vpack.c.b16 %v2040, %v2038
      %v2155 = vpack.c.b16 %v2043, %v2041
      %v2156 = vpack.c.b16 %v2044, %v2042
      %v2157 = vpack.c.b16 %v2047, %v2045
      %v2158 = vpack.c.b16 %v2048, %v2046
      %v2159 = vpack.c.b16 %v2051, %v2049
      %v2160 = vpack.c.b16 %v2052, %v2050
      %v2161 = vpack.c.b16 %v2055, %v2053
      %v2162 = vpack.c.b16 %v2056, %v2054
      %v2163 = vpack.c.b16 %v2059, %v2057
      %v2164 = vpack.c.b16 %v2060, %v2058
      %v2165 = vpack.c.b16 %v2063, %v2061
      %v2166 = vpack.c.b16 %v2064, %v2062
      %v2167 = vpack.c.b16 %v2067, %v2065
      %v2168 = vpack.c.b16 %v2068, %v2066
      %v2169 = vpack.c.b16 %v2071, %v2069
      %v2170 = vpack.c.b16 %v2072, %v2070
      %v2171 = vpack.c.b16 %v2075, %v2073
      %v2172 = vpack.c.b16 %v2076, %v2074
      %v2173 = vpack.c.b16 %v2079, %v2077
      %v2174 = vpack.c.b16 %v2080, %v2078
      %v2175 = vpack.c.b16 %v2083, %v2081
      %v2176 = vpack.c.b16 %v2084, %v2082
      %v2177 = vpack.c.b16 %v2087, %v2085
      %v2178 = vpack.c.b16 %v2088, %v2086
      %v2179 = vpack.c.b16 %v2091, %v2089
      %v2180 = vpack.c.b16 %v2092, %v2090
      %v2181 = vpack.c.b16 %v2095, %v2093
      %v2182 = vpack.c.b16 %v2096, %v2094
      %v2183 = vpack.c.b16 %v2099, %v2097
      %v2184 = vpack.c.b16 %v2100, %v2098
      %v2185 = vpack.c.b16 %v2103, %v2101
      %v2186 = vpack.c.b16 %v2104, %v2102
      %v2187 = vpack.c.b16 %v2107, %v2105
      %v2188 = vpack.c.b16 %v2108, %v2106
      %v2189 = vpack.c.b16 %v2111, %v2109
      %v2190 = vpack.c.b16 %v2112, %v2110
      %v2191 = vpack.c.b16 %v2115, %v2113
      %v2192 = vpack.c.b16 %v2116, %v2114
      %v2193 = vpack.c.b16 %v2119, %v2117
      %v2194 = vpack.c.b16 %v2120, %v2118
      %v2195 = vpack.c.b16 %v2123, %v2121
      %v2196 = vpack.c.b16 %v2124, %v2122
      %v2197 = vpack.c.b16 %v2127, %v2125
      %v2198 = vpack.c.b16 %v2128, %v2126
      %v2199 = vpack.c.b16 %v2131, %v2129
      %v2200 = vpack.c.b16 %v2132, %v2130
      %v2201 = vpack.c.b16 %v2135, %v2133
      %v2202 = vpack.c.b16 %v2136, %v2134
      %v2203 = vpack.c.b16 %v2139, %v2137
      %v2204 = vpack.c.b16 %v2140, %v2138
      %2269 = vmatprep.subr.bf16.mxu0 %v2142
      %2270 = vmatpush1.bf16.msra.mxu0 %v2141
      %2271 = vmatprep.subr.bf16.mxu0 %v2144
      %2272 = vmatpush1.bf16.msra.mxu0 %v2143
      %2273 = vmatprep.subr.bf16.mxu0 %v2146
      %2274 = vmatpush1.bf16.msra.mxu0 %v2145
      %2275 = vmatprep.subr.bf16.mxu0 %v2148
      %2276 = vmatpush1.bf16.msra.mxu0 %v2147
      %2277 = vmatprep.subr.bf16.mxu0 %v2150
      %2278 = vmatpush1.bf16.msra.mxu0 %v2149
      %2279 = vmatprep.subr.bf16.mxu0 %v2152
      %2280 = vmatpush1.bf16.msra.mxu0 %v2151
      %2281 = vmatprep.subr.bf16.mxu0 %v2154
      %2282 = vmatpush1.bf16.msra.mxu0 %v2153
      %2283 = vmatprep.subr.bf16.mxu0 %v2156
      %2284 = vmatpush1.bf16.msra.mxu0 %v2155
      %2285 = vmatprep.subr.bf16.mxu0 %v2158
      %2286 = vmatpush1.bf16.msra.mxu0 %v2157
      %2287 = vmatprep.subr.bf16.mxu0 %v2160
      %2288 = vmatpush1.bf16.msra.mxu0 %v2159
      %2289 = vmatprep.subr.bf16.mxu0 %v2162
      %2290 = vmatpush1.bf16.msra.mxu0 %v2161
      %2291 = vmatprep.subr.bf16.mxu0 %v2164
      %2292 = vmatpush1.bf16.msra.mxu0 %v2163
      %2293 = vmatprep.subr.bf16.mxu0 %v2166
      %2294 = vmatpush1.bf16.msra.mxu0 %v2165
      %2295 = vmatprep.subr.bf16.mxu0 %v2168
      %2296 = vmatpush1.bf16.msra.mxu0 %v2167
      %2297 = vmatprep.subr.bf16.mxu0 %v2170
      %2298 = vmatpush1.bf16.msra.mxu0 %v2169
      %2299 = vmatprep.subr.bf16.mxu0 %v2172
      %2300 = vmatpush1.bf16.msra.mxu0 %v2171
      %2301 = vmatprep.mubr.bf16.mxu0 %v1400
      %2302 = vmatmul.mubr.bf16.gmra.mrb[0].mxu0 %v1399
      %v2303 = vpop.f32.mrb[0].mxu0
      %v2304 = vadd.f32 %v1943, %v2303
      %v2305 = vpop.f32.mrb[0].mxu0
      %v2306 = vadd.f32 %v1945, %v2305
      %v2307 = vpop.f32.mrb[0].mxu0
      %v2308 = vpop.f32.mrb[0].mxu0
      %2309 = vdwg.mxu0
      %2310 = vmatprep.subr.bf16.mxu0 %v2174
      %2311 = vmatpush1.bf16.msra.mxu0 %v2173
      %2312 = vmatprep.subr.bf16.mxu0 %v2176
      %2313 = vmatpush1.bf16.msra.mxu0 %v2175
      %2314 = vmatprep.subr.bf16.mxu0 %v2178
      %2315 = vmatpush1.bf16.msra.mxu0 %v2177
      %2316 = vmatprep.subr.bf16.mxu0 %v2180
      %2317 = vmatpush1.bf16.msra.mxu0 %v2179
      %2318 = vmatprep.subr.bf16.mxu0 %v2182
      %2319 = vmatpush1.bf16.msra.mxu0 %v2181
      %2320 = vmatprep.subr.bf16.mxu0 %v2184
      %2321 = vmatpush1.bf16.msra.mxu0 %v2183
      %2322 = vmatprep.subr.bf16.mxu0 %v2186
      %2323 = vmatpush1.bf16.msra.mxu0 %v2185
      %2324 = vmatprep.subr.bf16.mxu0 %v2188
      %2325 = vmatpush1.bf16.msra.mxu0 %v2187
      %2326 = vmatprep.subr.bf16.mxu0 %v2190
      %2327 = vmatpush1.bf16.msra.mxu0 %v2189
      %2328 = vmatprep.subr.bf16.mxu0 %v2192
      %2329 = vmatpush1.bf16.msra.mxu0 %v2191
      %2330 = vmatprep.subr.bf16.mxu0 %v2194
      %2331 = vmatpush1.bf16.msra.mxu0 %v2193
      %2332 = vmatprep.subr.bf16.mxu0 %v2196
      %2333 = vmatpush1.bf16.msra.mxu0 %v2195
      %2334 = vmatprep.subr.bf16.mxu0 %v2198
      %2335 = vmatpush1.bf16.msra.mxu0 %v2197
      %2336 = vmatprep.subr.bf16.mxu0 %v2200
      %2337 = vmatpush1.bf16.msra.mxu0 %v2199
      %2338 = vmatprep.subr.bf16.mxu0 %v2202
      %2339 = vmatpush1.bf16.msra.mxu0 %v2201
      %2340 = vmatprep.subr.bf16.mxu0 %v2204
      %2341 = vmatpush1.bf16.msra.mxu0 %v2203
      %2342 = vmatprep.mubr.bf16.mxu0 %v1402
      %2343 = vmatmul.mubr.bf16.gmra.mrb[0].mxu0 %v1401
      %v2344 = vpop.f32.mrb[0].mxu0
      %v2345 = vadd.f32 %v2304, %v2344
      %v2346 = vpop.f32.mrb[0].mxu0
      %v2347 = vadd.f32 %v2306, %v2346
      %v2348 = vpop.f32.mrb[0].mxu0
      %v2349 = vpop.f32.mrb[0].mxu0
      %2350 = vdwg.mxu0
      %v2351 = vld [vmem:[%s6] sm:$0x3]
      %v2353 = vlaneseq
      %v2354 = vshrl.u32 %v2353, 7
      %v2355 = vsub.s32 0, %v2354
      %v2356 = vrot.slane %v2351, %v2355
      %v2357 = vlaneseq
      %v2358 = vshrl.u32 %v2357, 7
      %v2359 = vsub.s32 1, %v2358
      %v2360 = vrot.slane %v2351, %v2359
      %v2363 = vadd.f32 %v2345, %v2356
      %v2364 = vadd.f32 %v2347, %v2360
      %v2365 = vmax.f32 %v2363, 0.0
      %v2366 = vmax.f32 %v2364, 0.0
      %v2367 = vld [vmem:[%s7] sm:$0x3]
      %v2369 = vlaneseq
      %v2370 = vshrl.u32 %v2369, 7
      %v2371 = vsub.s32 0, %v2370
      %v2372 = vrot.slane %v2367, %v2371
      %v2373 = vlaneseq
      %v2374 = vshrl.u32 %v2373, 7
      %v2375 = vsub.s32 1, %v2374
      %v2376 = vrot.slane %v2367, %v2375
      %v2379 = vmul.f32 %v2365, %v2372
      %v2380 = vmul.f32 %v2366, %v2376
      %vm2381 = vcmask 1040384
      %v2382 = vsel %vm2381, %v2379, 0.0
      %v2383 = vsel %vm2381, %v2380, 0.0
      %v2384 = vadd.f32 %v2382, %v2383
      %2385 = vadd.xlane.f32.xlu0 %v2384
      %v2386 = vpop.xlane.xlu0 %2385
      %v2387 = vld [vmem:[#allocation2] sm:$0x1]
      %v2388 = vadd.f32 %v2386, %v2387
      %vm2389 = vcmask 0
      %2390 = vst.msk [vmem:[%s335] sm:$0x1] %vm2389, %v2388
      %p2391 = scmp.lt.s32.totalorder %s22, 1
      %s2392 = scalar_select %p2391, %s22, 1
      %s2393 = scalar_lea.vmem %s9, %s2392
      // Predicated region
      $region57: #{siamese_forward.1} parent=55 // pred_check
        %p2394 = pneg %p234
      $region58: #{siamese_forward.1} parent=55 // pred_check_branch
        %2396 = sbr.rel (%p2394) target = $region60
      $region59: #{siamese_forward.1} parent=55 // pred_region
        _
      $region60: #{siamese_forward.1} parent=55 // pred_fallthru
        _
    $region56: #{siamese_forward.1} parent=5 // pred_fallthru
      _
    %p2397 = scmp.le.s32.totalorder 2, %s17
    // Predicated region
    $region61: #{siamese_forward.1} parent=5 // pred_check
      %p2398 = pneg %p2397
    $region62: #{siamese_forward.1} parent=5 // pred_check_branch
      %2400 = sbr.rel (%p2398) target = $region64
    $region63: #{siamese_forward.1} parent=5 // pred_region
      %s2401 = ssub.s32 %s17, 2
      // Predicated region
      $region65: #{siamese_forward.1} parent=63 // pred_check
        %p2402 = pneg %p240
      $region66: #{siamese_forward.1} parent=63 // pred_check_branch
        %2404 = sbr.rel (%p2402) target = $region68
      $region67: #{siamese_forward.1} parent=63 // pred_region
        %p2405 = scmp.lt.s32.totalorder %s23, 1
        %s2406 = scalar_select %p2405, %s23, 1
        %s2407 = scalar_lea.vmem %s9, %s2406
      $region68: #{siamese_forward.1} parent=63 // pred_fallthru
        _
    $region64: #{siamese_forward.1} parent=5 // pred_fallthru
      _
  $region6: #{siamese_forward.1} parent=0 // loop_footer
    %s21 = sadd.s32 1, %s17
  $region7: #{siamese_forward.1} parent=0 // loop_footer_branch
    %16 = sbr.rel target = $region3
  $region8: #{siamese_forward.1} parent=0 // loop_exit
    _

</llo_original>
